<compile_context>
chip_gen: v5e
topology: v5e:2x2
jax: 0.10.0
libtpu: 0.0.40
codegen_flags: <defaults>
</compile_context>

<pallas_src>
import jax
import jax.numpy as jnp
from jax.experimental import pallas as pl
from jax.experimental.pallas import tpu as pltpu


# --------------------- host-side, one-time weight lowering ------------------ #

def lower_conv_weight(w, ow_out):
    """Lower an OIHW conv weight to per-kernel-row banded matrices.

    w: [OC, C, KH, KW]  ->  out: [KH, (OW+KW-1)*C, OW*OC]  with
        out[di, (ow+dj)*C + c, ow*OC + oc] = w[oc, c, di, dj]
    so that for one image with row layout X[h, w*C + c]:
        conv_out[oh, ow*OC + oc] = sum_di (X[oh+di, :] @ out[di])[ow*OC + oc]
    """
    oc_n, c_n, kh, kw = w.shape
    w_in = ow_out + kw - 1
    dj_g, ow_g, c_g, oc_g = jnp.meshgrid(
        jnp.arange(kw), jnp.arange(ow_out), jnp.arange(c_n), jnp.arange(oc_n),
        indexing="ij")                                  # each [KW, OW, C, OC]
    rows = (ow_g + dj_g) * c_n + c_g
    cols = ow_g * oc_n + oc_g
    vals = jnp.transpose(w, (2, 3, 1, 0)).astype(jnp.float32)   # [KH, KW, C, OC]
    vals = jnp.broadcast_to(vals[:, :, None, :, :], (kh, kw, ow_out, c_n, oc_n))
    out = jnp.zeros((kh, w_in * c_n, ow_out * oc_n), jnp.float32)
    return out.at[:, rows, cols].set(vals)


def pool_row_matrix(oh_out):
    """[OH_out, 2*OH_out] matrix averaging consecutive row pairs (0.5, 0.5)."""
    i = jnp.arange(oh_out)
    m = jnp.zeros((oh_out, 2 * oh_out), jnp.float32)
    return m.at[i, 2 * i].set(0.5).at[i, 2 * i + 1].set(0.5)


def pool_col_matrix(ow_out, c_n):
    """[2*OW_out*C, OW_out*C] matrix averaging width pairs per channel."""
    j_g, c_g = jnp.meshgrid(jnp.arange(ow_out), jnp.arange(c_n), indexing="ij")
    cols = j_g * c_n + c_g
    m = jnp.zeros((2 * ow_out * c_n, ow_out * c_n), jnp.float32)
    m = m.at[(2 * j_g) * c_n + c_g, cols].set(0.5)
    m = m.at[(2 * j_g + 1) * c_n + c_g, cols].set(0.5)
    return m


def prepare_params(p, batch):
    """One-time lowering of PyTorch-layout parameters into kernel layout.

    * conv weights: banded + KH stacked along K  (single matmul per conv)
    * column-pool matrices folded into the NEXT layer's weight
    * conv3 lowered to a flattened FC weight
    * row-pool matrices made block-diagonal over the (static) batch
    """
    w1b = lower_conv_weight(p["conv1_w"], 28)          # [5, 32, 168]
    w2b = lower_conv_weight(p["conv2_w"], 10)          # [5, 84, 160]
    w3b = lower_conv_weight(p["conv3_w"], 1)           # [5, 80, 120]
    pc1 = pool_col_matrix(14, 6)                       # [168, 84]
    pc2 = pool_col_matrix(5, 16)                       # [160, 80]
    eye_b = jnp.eye(batch, dtype=jnp.float32)
    return {
        # conv1: K = KH*W_in*C = 160, N = 28*6 = 168
        "w1": w1b.reshape(5 * 32, 28 * 6),
        "b1": jnp.tile(p["conv1_b"].astype(jnp.float32), 28)[None, :],   # [1, 168]
        # batched row pool 1: [B*14, B*28]
        "pr1": jnp.kron(eye_b, pool_row_matrix(14)),
        # conv2 with pc1 folded in: K = 5*168 = 840, N = 10*16 = 160
        "w2": jnp.concatenate([pc1 @ w2b[di] for di in range(5)], axis=0),
        "b2": jnp.tile(p["conv2_b"].astype(jnp.float32), 10)[None, :],   # [1, 160]
        # batched row pool 2: [B*5, B*10]
        "pr2": jnp.kron(eye_b, pool_row_matrix(5)),
        # conv3 as FC with pc2 folded in: K = 5*160 = 800, N = 120
        "w3": jnp.concatenate([pc2 @ w3b[di] for di in range(5)], axis=0),
        "b3": p["conv3_b"].astype(jnp.float32)[None, :],                 # [1, 120]
        "fw1": p["lin1_w"].T.astype(jnp.float32),                        # [120, 84]
        "fb1": p["lin1_b"].astype(jnp.float32)[None, :],                 # [1, 84]
        "fw2": p["lin2_w"].T.astype(jnp.float32),                        # [84, 10]
        "fb2": p["lin2_b"].astype(jnp.float32)[None, :],                 # [1, 10]
    }


# ------------------------------ fused Pallas kernel -------------------------- #

def lenet_kernel(x_ref, w1_ref, b1_ref, pr1_ref, w2_ref, b2_ref, pr2_ref,
                 w3_ref, b3_ref, fw1_ref, fb1_ref, fw2_ref, fb2_ref, out_ref):
    f32 = jnp.float32
    batch = x_ref.shape[0]
    kh = 5

    # ---- conv1 + ReLU: build [B*28, 160] operand (KH folded into K, batch
    #      folded into M) and do ONE matmul against the [160, 168] weight. ----
    op1 = jnp.concatenate(
        [jnp.concatenate([x_ref[b, di:di + 28, :] for di in range(kh)], axis=-1)
         for b in range(batch)], axis=0)                              # [B*28, 160]
    a1 = jnp.maximum(
        jnp.dot(op1, w1_ref[...], preferred_element_type=f32) + b1_ref[...],
        0.0)                                                          # [B*28, 168]

    # ---- row pool (2x1 avg) for the whole batch in one matmul;
    #      the column pool is folded into w2. ----
    r1 = jnp.dot(pr1_ref[...], a1, preferred_element_type=f32)        # [B*14, 168]

    # ---- conv2 + ReLU: [B*10, 840] @ [840, 160], one matmul. ----
    op2 = jnp.concatenate(
        [jnp.concatenate([r1[b * 14 + di:b * 14 + di + 10, :] for di in range(kh)],
                         axis=-1)
         for b in range(batch)], axis=0)                              # [B*10, 840]
    a2 = jnp.maximum(
        jnp.dot(op2, w2_ref[...], preferred_element_type=f32) + b2_ref[...],
        0.0)                                                          # [B*10, 160]

    # ---- row pool 2 ----
    r2 = jnp.dot(pr2_ref[...], a2, preferred_element_type=f32)        # [B*5, 160]

    # ---- conv3 + ReLU as a single FC: [B, 800] @ [800, 120]
    #      (column pool pc2 folded into the weight). ----
    op3 = jnp.concatenate(
        [jnp.concatenate([r2[b * 5 + di:b * 5 + di + 1, :] for di in range(kh)],
                         axis=-1)
         for b in range(batch)], axis=0)                              # [B, 800]
    a3 = jnp.maximum(
        jnp.dot(op3, w3_ref[...], preferred_element_type=f32) + b3_ref[...],
        0.0)                                                          # [B, 120]

    # ---- fully-connected head ----
    h = jnp.maximum(
        jnp.dot(a3, fw1_ref[...], preferred_element_type=f32) + fb1_ref[...],
        0.0)                                                          # [B, 84]
    out_ref[...] = (jnp.dot(h, fw2_ref[...], preferred_element_type=f32)
                    + fb2_ref[...]).astype(out_ref.dtype)             # [B, 10]


_VMEM = pl.BlockSpec(memory_space=pltpu.MemorySpace.VMEM)


@jax.jit
def lenet_forward(x, kp):
    """x: [B, 1, 32, 32] NCHW (C=1), kp: output of prepare_params(params, B)."""
    batch = x.shape[0]
    x2 = x.reshape(batch, 32, 32).astype(jnp.float32)   # drop singleton channel
    return pl.pallas_call(
        lenet_kernel,
        out_shape=jax.ShapeDtypeStruct((batch, 10), jnp.float32),
        in_specs=[_VMEM] * 13,
        out_specs=_VMEM,
    )(x2, kp["w1"], kp["b1"], kp["pr1"], kp["w2"], kp["b2"], kp["pr2"],
      kp["w3"], kp["b3"], kp["fw1"], kp["fb1"], kp["fw2"], kp["fb2"])


# ------------------------------- parameters --------------------------------- #

def init_params(key):
    ks = jax.random.split(key, 10)

    def u(k, shape, fan_in):
        bound = 1.0 / jnp.sqrt(fan_in)
        return jax.random.uniform(k, shape, jnp.float32, -bound, bound)

    return {
        "conv1_w": u(ks[0], (6, 1, 5, 5), 1 * 5 * 5),
        "conv1_b": u(ks[1], (6,), 1 * 5 * 5),
        "conv2_w": u(ks[2], (16, 6, 5, 5), 6 * 5 * 5),
        "conv2_b": u(ks[3], (16,), 6 * 5 * 5),
        "conv3_w": u(ks[4], (120, 16, 5, 5), 16 * 5 * 5),
        "conv3_b": u(ks[5], (120,), 16 * 5 * 5),
        "lin1_w": u(ks[6], (84, 120), 120),
        "lin1_b": u(ks[7], (84,), 120),
        "lin2_w": u(ks[8], (10, 84), 84),
        "lin2_b": u(ks[9], (10,), 84),
    }


# ------------------------------ pure-JAX reference --------------------------- #

def lenet_reference(x, p):
    def conv(x, w, b):
        y = jax.lax.conv_general_dilated(
            x, w, window_strides=(1, 1), padding="VALID",
            dimension_numbers=("NCHW", "OIHW", "NCHW"))
        return jnp.maximum(y + b[None, :, None, None], 0.0)

    def pool(x):
        bsz, c, h, w = x.shape
        return x.reshape(bsz, c, h // 2, 2, w // 2, 2).mean(axis=(3, 5))

    x = pool(conv(x, p["conv1_w"], p["conv1_b"]))
    x = pool(conv(x, p["conv2_w"], p["conv2_b"]))
    x = conv(x, p["conv3_w"], p["conv3_b"])
    x = x.reshape(x.shape[0], -1)
    x = jnp.maximum(x @ p["lin1_w"].T + p["lin1_b"], 0.0)
    return x @ p["lin2_w"].T + p["lin2_b"]


if __name__ == "__main__":
    key = jax.random.PRNGKey(0)
    k_x, k_p = jax.random.split(key)

    # Classic LeNet input: [B, 1, 32, 32] (NCHW), B=2.
    B = 2
    x = jax.random.normal(k_x, (B, 1, 32, 32), jnp.float32)
    params = init_params(k_p)
    kparams = prepare_params(params, B)   # one-time host-side weight lowering

    out = jax.block_until_ready(lenet_forward(x, kparams))
    ref = jax.block_until_ready(lenet_reference(x, params))

    assert out.shape == (B, 10), out.shape
    assert jnp.allclose(out, ref, atol=1e-4, rtol=1e-4), "mismatch vs reference"

    print("KERNEL_OK")
</pallas_src>

<mosaic_0001>
module attributes {stable_mosaic.version = 11 : i64} {
  func.func @lenet_kernel(%arg0: memref<2x32x32xf32, #tpu.memory_space<vmem>>, %arg1: memref<160x168xf32, #tpu.memory_space<vmem>>, %arg2: memref<1x168xf32, #tpu.memory_space<vmem>>, %arg3: memref<28x56xf32, #tpu.memory_space<vmem>>, %arg4: memref<840x160xf32, #tpu.memory_space<vmem>>, %arg5: memref<1x160xf32, #tpu.memory_space<vmem>>, %arg6: memref<10x20xf32, #tpu.memory_space<vmem>>, %arg7: memref<800x120xf32, #tpu.memory_space<vmem>>, %arg8: memref<1x120xf32, #tpu.memory_space<vmem>>, %arg9: memref<120x84xf32, #tpu.memory_space<vmem>>, %arg10: memref<1x84xf32, #tpu.memory_space<vmem>>, %arg11: memref<84x10xf32, #tpu.memory_space<vmem>>, %arg12: memref<1x10xf32, #tpu.memory_space<vmem>>, %arg13: memref<2x10xf32, #tpu.memory_space<vmem>>) attributes {dimension_semantics = [], scalar_prefetch = 0 : i64, scratch_operands = 0 : i64, tpu.core_type = #tpu.core_type<tc>} {
    %c0 = arith.constant 0 : index
    %c0_0 = arith.constant 0 : index
    %c0_1 = arith.constant 0 : index
    %0 = vector.load %arg0[%c0, %c0_0, %c0_1] : memref<2x32x32xf32, #tpu.memory_space<vmem>>, vector<1x28x32xf32>
    %1 = vector.shape_cast %0 : vector<1x28x32xf32> to vector<28x32xf32>
    %c0_2 = arith.constant 0 : index
    %c1 = arith.constant 1 : index
    %c0_3 = arith.constant 0 : index
    %2 = vector.load %arg0[%c0_2, %c1, %c0_3] : memref<2x32x32xf32, #tpu.memory_space<vmem>>, vector<1x28x32xf32>
    %3 = vector.shape_cast %2 : vector<1x28x32xf32> to vector<28x32xf32>
    %c0_4 = arith.constant 0 : index
    %c2 = arith.constant 2 : index
    %c0_5 = arith.constant 0 : index
    %4 = vector.load %arg0[%c0_4, %c2, %c0_5] : memref<2x32x32xf32, #tpu.memory_space<vmem>>, vector<1x28x32xf32>
    %5 = vector.shape_cast %4 : vector<1x28x32xf32> to vector<28x32xf32>
    %c0_6 = arith.constant 0 : index
    %c3 = arith.constant 3 : index
    %c0_7 = arith.constant 0 : index
    %6 = vector.load %arg0[%c0_6, %c3, %c0_7] : memref<2x32x32xf32, #tpu.memory_space<vmem>>, vector<1x28x32xf32>
    %7 = vector.shape_cast %6 : vector<1x28x32xf32> to vector<28x32xf32>
    %c0_8 = arith.constant 0 : index
    %c4 = arith.constant 4 : index
    %c0_9 = arith.constant 0 : index
    %8 = vector.load %arg0[%c0_8, %c4, %c0_9] : memref<2x32x32xf32, #tpu.memory_space<vmem>>, vector<1x28x32xf32>
    %9 = vector.shape_cast %8 : vector<1x28x32xf32> to vector<28x32xf32>
    %10 = tpu.concatenate %1, %3, %5, %7, %9 in 1 : vector<28x32xf32>, vector<28x32xf32>, vector<28x32xf32>, vector<28x32xf32>, vector<28x32xf32> -> vector<28x160xf32>
    %c1_10 = arith.constant 1 : index
    %c0_11 = arith.constant 0 : index
    %c0_12 = arith.constant 0 : index
    %11 = vector.load %arg0[%c1_10, %c0_11, %c0_12] : memref<2x32x32xf32, #tpu.memory_space<vmem>>, vector<1x28x32xf32>
    %12 = vector.shape_cast %11 : vector<1x28x32xf32> to vector<28x32xf32>
    %c1_13 = arith.constant 1 : index
    %c1_14 = arith.constant 1 : index
    %c0_15 = arith.constant 0 : index
    %13 = vector.load %arg0[%c1_13, %c1_14, %c0_15] : memref<2x32x32xf32, #tpu.memory_space<vmem>>, vector<1x28x32xf32>
    %14 = vector.shape_cast %13 : vector<1x28x32xf32> to vector<28x32xf32>
    %c1_16 = arith.constant 1 : index
    %c2_17 = arith.constant 2 : index
    %c0_18 = arith.constant 0 : index
    %15 = vector.load %arg0[%c1_16, %c2_17, %c0_18] : memref<2x32x32xf32, #tpu.memory_space<vmem>>, vector<1x28x32xf32>
    %16 = vector.shape_cast %15 : vector<1x28x32xf32> to vector<28x32xf32>
    %c1_19 = arith.constant 1 : index
    %c3_20 = arith.constant 3 : index
    %c0_21 = arith.constant 0 : index
    %17 = vector.load %arg0[%c1_19, %c3_20, %c0_21] : memref<2x32x32xf32, #tpu.memory_space<vmem>>, vector<1x28x32xf32>
    %18 = vector.shape_cast %17 : vector<1x28x32xf32> to vector<28x32xf32>
    %c1_22 = arith.constant 1 : index
    %c4_23 = arith.constant 4 : index
    %c0_24 = arith.constant 0 : index
    %19 = vector.load %arg0[%c1_22, %c4_23, %c0_24] : memref<2x32x32xf32, #tpu.memory_space<vmem>>, vector<1x28x32xf32>
    %20 = vector.shape_cast %19 : vector<1x28x32xf32> to vector<28x32xf32>
    %21 = tpu.concatenate %12, %14, %16, %18, %20 in 1 : vector<28x32xf32>, vector<28x32xf32>, vector<28x32xf32>, vector<28x32xf32>, vector<28x32xf32> -> vector<28x160xf32>
    %22 = tpu.concatenate %10, %21 in 0 : vector<28x160xf32>, vector<28x160xf32> -> vector<56x160xf32>
    %c0_25 = arith.constant 0 : index
    %c0_26 = arith.constant 0 : index
    %23 = vector.load %arg1[%c0_25, %c0_26] : memref<160x168xf32, #tpu.memory_space<vmem>>, vector<160x168xf32>
    %cst = arith.constant dense<0.000000e+00> : vector<56x168xf32>
    %24 = tpu.matmul %22, %23, %cst {dimension_numbers = #tpu.dot_dimension_numbers<[1], [0], [0], [1], [0, 0, 1, 1], [], []>} : vector<56x160xf32>, vector<160x168xf32>, vector<56x168xf32> -> vector<56x168xf32>
    %c0_27 = arith.constant 0 : index
    %c0_28 = arith.constant 0 : index
    %25 = vector.load %arg2[%c0_27, %c0_28] : memref<1x168xf32, #tpu.memory_space<vmem>>, vector<1x168xf32>
    %26 = vector.broadcast %25 : vector<1x168xf32> to vector<56x168xf32>
    %27 = arith.addf %24, %26 : vector<56x168xf32>
    %cst_29 = arith.constant 0.000000e+00 : f32
    %28 = vector.broadcast %cst_29 : f32 to vector<56x168xf32>
    %29 = arith.maximumf %27, %28 : vector<56x168xf32>
    %c0_30 = arith.constant 0 : index
    %c0_31 = arith.constant 0 : index
    %30 = vector.load %arg3[%c0_30, %c0_31] : memref<28x56xf32, #tpu.memory_space<vmem>>, vector<28x56xf32>
    %cst_32 = arith.constant dense<0.000000e+00> : vector<28x168xf32>
    %31 = tpu.matmul %30, %29, %cst_32 {dimension_numbers = #tpu.dot_dimension_numbers<[1], [0], [0], [1], [0, 0, 1, 1], [], []>} : vector<28x56xf32>, vector<56x168xf32>, vector<28x168xf32> -> vector<28x168xf32>
    %32 = vector.extract_strided_slice %31 {offsets = [0, 0], sizes = [10, 168], strides = [1, 1]} : vector<28x168xf32> to vector<10x168xf32>
    %33 = vector.extract_strided_slice %31 {offsets = [1, 0], sizes = [10, 168], strides = [1, 1]} : vector<28x168xf32> to vector<10x168xf32>
    %34 = vector.extract_strided_slice %31 {offsets = [2, 0], sizes = [10, 168], strides = [1, 1]} : vector<28x168xf32> to vector<10x168xf32>
    %35 = vector.extract_strided_slice %31 {offsets = [3, 0], sizes = [10, 168], strides = [1, 1]} : vector<28x168xf32> to vector<10x168xf32>
    %36 = vector.extract_strided_slice %31 {offsets = [4, 0], sizes = [10, 168], strides = [1, 1]} : vector<28x168xf32> to vector<10x168xf32>
    %37 = tpu.concatenate %32, %33, %34, %35, %36 in 1 : vector<10x168xf32>, vector<10x168xf32>, vector<10x168xf32>, vector<10x168xf32>, vector<10x168xf32> -> vector<10x840xf32>
    %38 = vector.extract_strided_slice %31 {offsets = [14, 0], sizes = [10, 168], strides = [1, 1]} : vector<28x168xf32> to vector<10x168xf32>
    %39 = vector.extract_strided_slice %31 {offsets = [15, 0], sizes = [10, 168], strides = [1, 1]} : vector<28x168xf32> to vector<10x168xf32>
    %40 = vector.extract_strided_slice %31 {offsets = [16, 0], sizes = [10, 168], strides = [1, 1]} : vector<28x168xf32> to vector<10x168xf32>
    %41 = vector.extract_strided_slice %31 {offsets = [17, 0], sizes = [10, 168], strides = [1, 1]} : vector<28x168xf32> to vector<10x168xf32>
    %42 = vector.extract_strided_slice %31 {offsets = [18, 0], sizes = [10, 168], strides = [1, 1]} : vector<28x168xf32> to vector<10x168xf32>
    %43 = tpu.concatenate %38, %39, %40, %41, %42 in 1 : vector<10x168xf32>, vector<10x168xf32>, vector<10x168xf32>, vector<10x168xf32>, vector<10x168xf32> -> vector<10x840xf32>
    %44 = tpu.concatenate %37, %43 in 0 : vector<10x840xf32>, vector<10x840xf32> -> vector<20x840xf32>
    %c0_33 = arith.constant 0 : index
    %c0_34 = arith.constant 0 : index
    %45 = vector.load %arg4[%c0_33, %c0_34] : memref<840x160xf32, #tpu.memory_space<vmem>>, vector<840x160xf32>
    %cst_35 = arith.constant dense<0.000000e+00> : vector<20x160xf32>
    %46 = tpu.matmul %44, %45, %cst_35 {dimension_numbers = #tpu.dot_dimension_numbers<[1], [0], [0], [1], [0, 0, 1, 1], [], []>} : vector<20x840xf32>, vector<840x160xf32>, vector<20x160xf32> -> vector<20x160xf32>
    %c0_36 = arith.constant 0 : index
    %c0_37 = arith.constant 0 : index
    %47 = vector.load %arg5[%c0_36, %c0_37] : memref<1x160xf32, #tpu.memory_space<vmem>>, vector<1x160xf32>
    %48 = vector.broadcast %47 : vector<1x160xf32> to vector<20x160xf32>
    %49 = arith.addf %46, %48 : vector<20x160xf32>
    %cst_38 = arith.constant 0.000000e+00 : f32
    %50 = vector.broadcast %cst_38 : f32 to vector<20x160xf32>
    %51 = arith.maximumf %49, %50 : vector<20x160xf32>
    %c0_39 = arith.constant 0 : index
    %c0_40 = arith.constant 0 : index
    %52 = vector.load %arg6[%c0_39, %c0_40] : memref<10x20xf32, #tpu.memory_space<vmem>>, vector<10x20xf32>
    %cst_41 = arith.constant dense<0.000000e+00> : vector<10x160xf32>
    %53 = tpu.matmul %52, %51, %cst_41 {dimension_numbers = #tpu.dot_dimension_numbers<[1], [0], [0], [1], [0, 0, 1, 1], [], []>} : vector<10x20xf32>, vector<20x160xf32>, vector<10x160xf32> -> vector<10x160xf32>
    %54 = vector.extract_strided_slice %53 {offsets = [0, 0], sizes = [1, 160], strides = [1, 1]} : vector<10x160xf32> to vector<1x160xf32>
    %55 = vector.extract_strided_slice %53 {offsets = [1, 0], sizes = [1, 160], strides = [1, 1]} : vector<10x160xf32> to vector<1x160xf32>
    %56 = vector.extract_strided_slice %53 {offsets = [2, 0], sizes = [1, 160], strides = [1, 1]} : vector<10x160xf32> to vector<1x160xf32>
    %57 = vector.extract_strided_slice %53 {offsets = [3, 0], sizes = [1, 160], strides = [1, 1]} : vector<10x160xf32> to vector<1x160xf32>
    %58 = vector.extract_strided_slice %53 {offsets = [4, 0], sizes = [1, 160], strides = [1, 1]} : vector<10x160xf32> to vector<1x160xf32>
    %59 = tpu.concatenate %54, %55, %56, %57, %58 in 1 : vector<1x160xf32>, vector<1x160xf32>, vector<1x160xf32>, vector<1x160xf32>, vector<1x160xf32> -> vector<1x800xf32>
    %60 = vector.extract_strided_slice %53 {offsets = [5, 0], sizes = [1, 160], strides = [1, 1]} : vector<10x160xf32> to vector<1x160xf32>
    %61 = vector.extract_strided_slice %53 {offsets = [6, 0], sizes = [1, 160], strides = [1, 1]} : vector<10x160xf32> to vector<1x160xf32>
    %62 = vector.extract_strided_slice %53 {offsets = [7, 0], sizes = [1, 160], strides = [1, 1]} : vector<10x160xf32> to vector<1x160xf32>
    %63 = vector.extract_strided_slice %53 {offsets = [8, 0], sizes = [1, 160], strides = [1, 1]} : vector<10x160xf32> to vector<1x160xf32>
    %64 = vector.extract_strided_slice %53 {offsets = [9, 0], sizes = [1, 160], strides = [1, 1]} : vector<10x160xf32> to vector<1x160xf32>
    %65 = tpu.concatenate %60, %61, %62, %63, %64 in 1 : vector<1x160xf32>, vector<1x160xf32>, vector<1x160xf32>, vector<1x160xf32>, vector<1x160xf32> -> vector<1x800xf32>
    %66 = tpu.concatenate %59, %65 in 0 : vector<1x800xf32>, vector<1x800xf32> -> vector<2x800xf32>
    %c0_42 = arith.constant 0 : index
    %c0_43 = arith.constant 0 : index
    %67 = vector.load %arg7[%c0_42, %c0_43] : memref<800x120xf32, #tpu.memory_space<vmem>>, vector<800x120xf32>
    %cst_44 = arith.constant dense<0.000000e+00> : vector<2x120xf32>
    %68 = tpu.matmul %66, %67, %cst_44 {dimension_numbers = #tpu.dot_dimension_numbers<[1], [0], [0], [1], [0, 0, 1, 1], [], []>} : vector<2x800xf32>, vector<800x120xf32>, vector<2x120xf32> -> vector<2x120xf32>
    %c0_45 = arith.constant 0 : index
    %c0_46 = arith.constant 0 : index
    %69 = vector.load %arg8[%c0_45, %c0_46] : memref<1x120xf32, #tpu.memory_space<vmem>>, vector<1x120xf32>
    %70 = vector.broadcast %69 : vector<1x120xf32> to vector<2x120xf32>
    %71 = arith.addf %68, %70 : vector<2x120xf32>
    %cst_47 = arith.constant 0.000000e+00 : f32
    %72 = vector.broadcast %cst_47 : f32 to vector<2x120xf32>
    %73 = arith.maximumf %71, %72 : vector<2x120xf32>
    %c0_48 = arith.constant 0 : index
    %c0_49 = arith.constant 0 : index
    %74 = vector.load %arg9[%c0_48, %c0_49] : memref<120x84xf32, #tpu.memory_space<vmem>>, vector<120x84xf32>
    %cst_50 = arith.constant dense<0.000000e+00> : vector<2x84xf32>
    %75 = tpu.matmul %73, %74, %cst_50 {dimension_numbers = #tpu.dot_dimension_numbers<[1], [0], [0], [1], [0, 0, 1, 1], [], []>} : vector<2x120xf32>, vector<120x84xf32>, vector<2x84xf32> -> vector<2x84xf32>
    %c0_51 = arith.constant 0 : index
    %c0_52 = arith.constant 0 : index
    %76 = vector.load %arg10[%c0_51, %c0_52] : memref<1x84xf32, #tpu.memory_space<vmem>>, vector<1x84xf32>
    %77 = vector.broadcast %76 : vector<1x84xf32> to vector<2x84xf32>
    %78 = arith.addf %75, %77 : vector<2x84xf32>
    %cst_53 = arith.constant 0.000000e+00 : f32
    %79 = vector.broadcast %cst_53 : f32 to vector<2x84xf32>
    %80 = arith.maximumf %78, %79 : vector<2x84xf32>
    %c0_54 = arith.constant 0 : index
    %c0_55 = arith.constant 0 : index
    %81 = vector.load %arg11[%c0_54, %c0_55] : memref<84x10xf32, #tpu.memory_space<vmem>>, vector<84x10xf32>
    %cst_56 = arith.constant dense<0.000000e+00> : vector<2x10xf32>
    %82 = tpu.matmul %80, %81, %cst_56 {dimension_numbers = #tpu.dot_dimension_numbers<[1], [0], [0], [1], [0, 0, 1, 1], [], []>} : vector<2x84xf32>, vector<84x10xf32>, vector<2x10xf32> -> vector<2x10xf32>
    %c0_57 = arith.constant 0 : index
    %c0_58 = arith.constant 0 : index
    %83 = vector.load %arg12[%c0_57, %c0_58] : memref<1x10xf32, #tpu.memory_space<vmem>>, vector<1x10xf32>
    %84 = vector.broadcast %83 : vector<1x10xf32> to vector<2x10xf32>
    %85 = arith.addf %82, %84 : vector<2x10xf32>
    %c0_59 = arith.constant 0 : index
    %c0_60 = arith.constant 0 : index
    %86 = vector.load %arg13[%c0_59, %c0_60] : memref<2x10xf32, #tpu.memory_space<vmem>>, vector<2x10xf32>
    tpu.vector_store %arg13[%c0_59, %c0_60], %85 {strides = array<i32>} : memref<2x10xf32, #tpu.memory_space<vmem>>, vector<2x10xf32>,
    return
  }
}

</mosaic_0001>

<llo_original>
// kernel: lenet_forward.1
$region0: #{lenet_forward.1}
  #allocation0 [shape = 'u32[]', space=smem, size = 0x4, offset = 0x4, fixed_abs, tag = 'smem constant byte address 0x4 - core index']
  #allocation1 [shape = 'u32[72,128]{1,0:T(1,128)}', space=vmem, size = 0x9000, scoped, tag = 'internal scratch']
  %s0 = inlined_call_operand.vmem [shape: f32[2,32,32], index: 0, kind: input, shape index: {}]
  %s1 = inlined_call_operand.vmem [shape: f32[160,168], index: 1, kind: input, shape index: {}]
  %s2 = inlined_call_operand.vmem [shape: f32[1,168], index: 2, kind: input, shape index: {}]
  %s3 = inlined_call_operand.vmem [shape: f32[28,56], index: 3, kind: input, shape index: {}]
  %s4 = inlined_call_operand.vmem [shape: f32[840,160], index: 4, kind: input, shape index: {}]
  %s5 = inlined_call_operand.vmem [shape: f32[1,160], index: 5, kind: input, shape index: {}]
  %s6 = inlined_call_operand.vmem [shape: f32[10,20], index: 6, kind: input, shape index: {}]
  %s7 = inlined_call_operand.vmem [shape: f32[800,120], index: 7, kind: input, shape index: {}]
  %s8 = inlined_call_operand.vmem [shape: f32[1,120], index: 8, kind: input, shape index: {}]
  %s9 = inlined_call_operand.vmem [shape: f32[120,84], index: 9, kind: input, shape index: {}]
  %s10 = inlined_call_operand.vmem [shape: f32[1,84], index: 10, kind: input, shape index: {}]
  %s11 = inlined_call_operand.vmem [shape: f32[84,10], index: 11, kind: input, shape index: {}]
  %s12 = inlined_call_operand.vmem [shape: f32[1,10], index: 12, kind: input, shape index: {}]
  %s13 = inlined_call_operand.hbm [shape: f32[2,10], index: 13, kind: output, shape index: {}]
  %s14 = sld [smem:[#allocation0]]
  $region62: #{lenet_forward.1} parent=0
    _
  %s16 = ssub.s32 1, %s14
  %s17 = scalar_select 0, %s16, %s14
  $region1: #{lenet_forward.1} parent=0
    #allocation2 [shape = 'u8[1024]{0}', space=vmem, size = 0x400, scoped, tag = 'output window, operand 0, single buffered']
    #allocation3 [shape = 's32[1]{0}', space=sflag, size = 0x4, scoped, tag = 'scoped memory for lenet_forward.1']
    %18 = vsyncpa [#allocation3], 0
    // Predicated region
    $region2: #{lenet_forward.1} parent=1 // pred_check
      _
    $region3: #{lenet_forward.1} parent=1 // pred_check_branch
      %20 = sbr.rel (0) target = $region5
    $region4: #{lenet_forward.1} parent=1 // pred_region
      _
    $region5: #{lenet_forward.1} parent=1 // pred_fallthru
      _
    // Predicated region
    $region6: #{lenet_forward.1} parent=1 // pred_check
      _
    $region7: #{lenet_forward.1} parent=1 // pred_check_branch
      %22 = sbr.rel (0) target = $region9
    $region8: #{lenet_forward.1} parent=1 // pred_region
      _
    $region9: #{lenet_forward.1} parent=1 // pred_fallthru
      _
    // Predicated region
    $region10: #{lenet_forward.1} parent=1 // pred_check
      _
    $region11: #{lenet_forward.1} parent=1 // pred_check_branch
      %24 = sbr.rel (0) target = $region13
    $region12: #{lenet_forward.1} parent=1 // pred_region
      _
    $region13: #{lenet_forward.1} parent=1 // pred_fallthru
      _
    // Predicated region
    $region14: #{lenet_forward.1} parent=1 // pred_check
      _
    $region15: #{lenet_forward.1} parent=1 // pred_check_branch
      %26 = sbr.rel (0) target = $region17
    $region16: #{lenet_forward.1} parent=1 // pred_region
      _
    $region17: #{lenet_forward.1} parent=1 // pred_fallthru
      _
    // Predicated region
    $region18: #{lenet_forward.1} parent=1 // pred_check
      _
    $region19: #{lenet_forward.1} parent=1 // pred_check_branch
      %28 = sbr.rel (0) target = $region21
    $region20: #{lenet_forward.1} parent=1 // pred_region
      _
    $region21: #{lenet_forward.1} parent=1 // pred_fallthru
      _
    // Predicated region
    $region22: #{lenet_forward.1} parent=1 // pred_check
      _
    $region23: #{lenet_forward.1} parent=1 // pred_check_branch
      %30 = sbr.rel (0) target = $region25
    $region24: #{lenet_forward.1} parent=1 // pred_region
      _
    $region25: #{lenet_forward.1} parent=1 // pred_fallthru
      _
    // Predicated region
    $region26: #{lenet_forward.1} parent=1 // pred_check
      _
    $region27: #{lenet_forward.1} parent=1 // pred_check_branch
      %32 = sbr.rel (0) target = $region29
    $region28: #{lenet_forward.1} parent=1 // pred_region
      _
    $region29: #{lenet_forward.1} parent=1 // pred_fallthru
      _
    // Predicated region
    $region30: #{lenet_forward.1} parent=1 // pred_check
      _
    $region31: #{lenet_forward.1} parent=1 // pred_check_branch
      %34 = sbr.rel (0) target = $region33
    $region32: #{lenet_forward.1} parent=1 // pred_region
      _
    $region33: #{lenet_forward.1} parent=1 // pred_fallthru
      _
    // Predicated region
    $region34: #{lenet_forward.1} parent=1 // pred_check
      _
    $region35: #{lenet_forward.1} parent=1 // pred_check_branch
      %36 = sbr.rel (0) target = $region37
    $region36: #{lenet_forward.1} parent=1 // pred_region
      _
    $region37: #{lenet_forward.1} parent=1 // pred_fallthru
      _
    // Predicated region
    $region38: #{lenet_forward.1} parent=1 // pred_check
      _
    $region39: #{lenet_forward.1} parent=1 // pred_check_branch
      %38 = sbr.rel (0) target = $region41
    $region40: #{lenet_forward.1} parent=1 // pred_region
      _
    $region41: #{lenet_forward.1} parent=1 // pred_fallthru
      _
    // Predicated region
    $region42: #{lenet_forward.1} parent=1 // pred_check
      _
    $region43: #{lenet_forward.1} parent=1 // pred_check_branch
      %40 = sbr.rel (0) target = $region45
    $region44: #{lenet_forward.1} parent=1 // pred_region
      _
    $region45: #{lenet_forward.1} parent=1 // pred_fallthru
      _
    // Predicated region
    $region46: #{lenet_forward.1} parent=1 // pred_check
      _
    $region47: #{lenet_forward.1} parent=1 // pred_check_branch
      %42 = sbr.rel (0) target = $region49
    $region48: #{lenet_forward.1} parent=1 // pred_region
      _
    $region49: #{lenet_forward.1} parent=1 // pred_fallthru
      _
    // Predicated region
    $region50: #{lenet_forward.1} parent=1 // pred_check
      _
    $region51: #{lenet_forward.1} parent=1 // pred_check_branch
      %44 = sbr.rel (0) target = $region53
    $region52: #{lenet_forward.1} parent=1 // pred_region
      _
    $region53: #{lenet_forward.1} parent=1 // pred_fallthru
      _
    %v45 = vld [vmem:[%s0] sm:$0xff]
    %v46 = vld [vmem:[%s0 + $0x8] sm:$0xff]
    %v47 = vld [vmem:[%s0 + $0x10] sm:$0xff]
    %v48 = vld [vmem:[%s0 + $0x18] sm:$0xf]
    %v49 = vld [vmem:[%s0 + $0x1] sm:$0xff]
    %v50 = vld [vmem:[%s0 + $0x9] sm:$0xff]
    %v51 = vld [vmem:[%s0 + $0x11] sm:$0xff]
    %v52 = vld [vmem:[%s0 + $0x19] sm:$0xf]
    %v53 = vld [vmem:[%s0 + $0x2] sm:$0xff]
    %v54 = vld [vmem:[%s0 + $0xa] sm:$0xff]
    %v55 = vld [vmem:[%s0 + $0x12] sm:$0xff]
    %v56 = vld [vmem:[%s0 + $0x1a] sm:$0xf]
    %v57 = vld [vmem:[%s0 + $0x3] sm:$0xff]
    %v58 = vld [vmem:[%s0 + $0xb] sm:$0xff]
    %v59 = vld [vmem:[%s0 + $0x13] sm:$0xff]
    %v60 = vld [vmem:[%s0 + $0x1b] sm:$0xf]
    %v61 = vld [vmem:[%s0 + $0x4] sm:$0xff]
    %v62 = vld [vmem:[%s0 + $0xc] sm:$0xff]
    %v63 = vld [vmem:[%s0 + $0x14] sm:$0xff]
    %v64 = vld [vmem:[%s0 + $0x1c] sm:$0xf]
    %69 = vrot.lane.b32.xlu0 %v49, 32
    %v70 = vpop.permute.xlu0 %69
    %71 = vrot.lane.b32.xlu0 %v50, 32
    %v72 = vpop.permute.xlu0 %71
    %73 = vrot.lane.b32.xlu0 %v51, 32
    %v74 = vpop.permute.xlu0 %73
    %75 = vrot.lane.b32.xlu0 %v52, 32
    %v76 = vpop.permute.xlu0 %75
    %85 = vrot.lane.b32.xlu0 %v53, 64
    %v86 = vpop.permute.xlu0 %85
    %87 = vrot.lane.b32.xlu0 %v54, 64
    %v88 = vpop.permute.xlu0 %87
    %89 = vrot.lane.b32.xlu0 %v55, 64
    %v90 = vpop.permute.xlu0 %89
    %91 = vrot.lane.b32.xlu0 %v56, 64
    %v92 = vpop.permute.xlu0 %91
    %101 = vrot.lane.b32.xlu0 %v57, 96
    %v102 = vpop.permute.xlu0 %101
    %103 = vrot.lane.b32.xlu0 %v58, 96
    %v104 = vpop.permute.xlu0 %103
    %105 = vrot.lane.b32.xlu0 %v59, 96
    %v106 = vpop.permute.xlu0 %105
    %107 = vrot.lane.b32.xlu0 %v60, 96
    %v108 = vpop.permute.xlu0 %107
    %vm113 = vcmask 261120
    %v114 = vsel %vm113, %v45, %v70
    %v115 = vsel %vm113, %v46, %v72
    %v116 = vsel %vm113, %v47, %v74
    %v117 = vsel %vm113, %v48, %v76
    %vm118 = vcmask 523264
    %v119 = vsel %vm118, %v114, %v86
    %v120 = vsel %vm118, %v115, %v88
    %v121 = vsel %vm118, %v116, %v90
    %v122 = vsel %vm118, %v117, %v92
    %vm123 = vcmask 785408
    %v124 = vsel %vm123, %v119, %v102
    %v125 = vsel %vm123, %v120, %v104
    %v126 = vsel %vm123, %v121, %v106
    %v127 = vsel %vm123, %v122, %v108
    %s128 = scalar_lea.vmem %s0, 32
    %v129 = vld [vmem:[%s128] sm:$0xff]
    %v130 = vld [vmem:[%s128 + $0x8] sm:$0xff]
    %v131 = vld [vmem:[%s128 + $0x10] sm:$0xff]
    %v132 = vld [vmem:[%s128 + $0x18] sm:$0xf]
    %v133 = vld [vmem:[%s128 + $0x1] sm:$0xff]
    %v134 = vld [vmem:[%s128 + $0x9] sm:$0xff]
    %v135 = vld [vmem:[%s128 + $0x11] sm:$0xff]
    %v136 = vld [vmem:[%s128 + $0x19] sm:$0xf]
    %v137 = vld [vmem:[%s128 + $0x2] sm:$0xff]
    %v138 = vld [vmem:[%s128 + $0xa] sm:$0xff]
    %v139 = vld [vmem:[%s128 + $0x12] sm:$0xff]
    %v140 = vld [vmem:[%s128 + $0x1a] sm:$0xf]
    %v141 = vld [vmem:[%s128 + $0x3] sm:$0xff]
    %v142 = vld [vmem:[%s128 + $0xb] sm:$0xff]
    %v143 = vld [vmem:[%s128 + $0x13] sm:$0xff]
    %v144 = vld [vmem:[%s128 + $0x1b] sm:$0xf]
    %v145 = vld [vmem:[%s128 + $0x4] sm:$0xff]
    %v146 = vld [vmem:[%s128 + $0xc] sm:$0xff]
    %v147 = vld [vmem:[%s128 + $0x14] sm:$0xff]
    %v148 = vld [vmem:[%s128 + $0x1c] sm:$0xf]
    %153 = vrot.lane.b32.xlu0 %v133, 32
    %v154 = vpop.permute.xlu0 %153
    %155 = vrot.lane.b32.xlu0 %v134, 32
    %v156 = vpop.permute.xlu0 %155
    %157 = vrot.lane.b32.xlu0 %v135, 32
    %v158 = vpop.permute.xlu0 %157
    %159 = vrot.lane.b32.xlu0 %v136, 32
    %v160 = vpop.permute.xlu0 %159
    %169 = vrot.lane.b32.xlu0 %v137, 64
    %v170 = vpop.permute.xlu0 %169
    %171 = vrot.lane.b32.xlu0 %v138, 64
    %v172 = vpop.permute.xlu0 %171
    %173 = vrot.lane.b32.xlu0 %v139, 64
    %v174 = vpop.permute.xlu0 %173
    %175 = vrot.lane.b32.xlu0 %v140, 64
    %v176 = vpop.permute.xlu0 %175
    %185 = vrot.lane.b32.xlu0 %v141, 96
    %v186 = vpop.permute.xlu0 %185
    %187 = vrot.lane.b32.xlu0 %v142, 96
    %v188 = vpop.permute.xlu0 %187
    %189 = vrot.lane.b32.xlu0 %v143, 96
    %v190 = vpop.permute.xlu0 %189
    %191 = vrot.lane.b32.xlu0 %v144, 96
    %v192 = vpop.permute.xlu0 %191
    %v197 = vsel %vm113, %v129, %v154
    %v198 = vsel %vm113, %v130, %v156
    %v199 = vsel %vm113, %v131, %v158
    %v200 = vsel %vm113, %v132, %v160
    %v201 = vsel %vm118, %v197, %v170
    %v202 = vsel %vm118, %v198, %v172
    %v203 = vsel %vm118, %v199, %v174
    %v204 = vsel %vm118, %v200, %v176
    %v205 = vsel %vm123, %v201, %v186
    %v206 = vsel %vm123, %v202, %v188
    %v207 = vsel %vm123, %v203, %v190
    %v208 = vsel %vm123, %v204, %v192
    %vm217 = vcmask 1043456
    %v218 = vrot.slane %v205, 4
    %v219 = vrot.slane %v145, 4
    %v220 = vrot.slane %v206, 4
    %v221 = vsel %vm217, %v218, %v220
    %v222 = vrot.slane %v146, 4
    %v223 = vsel %vm217, %v219, %v222
    %v224 = vrot.slane %v207, 4
    %v225 = vsel %vm217, %v220, %v224
    %v226 = vrot.slane %v147, 4
    %v227 = vsel %vm217, %v222, %v226
    %v228 = vrot.slane %v208, 4
    %v229 = vsel %vm217, %v224, %v228
    %v230 = vrot.slane %v148, 4
    %v231 = vsel %vm217, %v226, %v230
    %v237 = vsel %vm217, %v127, %v218
    %v238 = vsel %vm217, %v64, %v219
    %v239 = vld [vmem:[%s1] sm:$0xff]
    %v240 = vld [vmem:[%s1 + $0x8] sm:$0xff]
    %v241 = vld [vmem:[%s1 + $0x10] sm:$0xff]
    %v242 = vld [vmem:[%s1 + $0x18] sm:$0xff]
    %v243 = vld [vmem:[%s1 + $0x20] sm:$0xff]
    %v244 = vld [vmem:[%s1 + $0x28] sm:$0xff]
    %v245 = vld [vmem:[%s1 + $0x30] sm:$0xff]
    %v246 = vld [vmem:[%s1 + $0x38] sm:$0xff]
    %v247 = vld [vmem:[%s1 + $0x40] sm:$0xff]
    %v248 = vld [vmem:[%s1 + $0x48] sm:$0xff]
    %v249 = vld [vmem:[%s1 + $0x50] sm:$0xff]
    %v250 = vld [vmem:[%s1 + $0x58] sm:$0xff]
    %v251 = vld [vmem:[%s1 + $0x60] sm:$0xff]
    %v252 = vld [vmem:[%s1 + $0x68] sm:$0xff]
    %v253 = vld [vmem:[%s1 + $0x70] sm:$0xff]
    %v254 = vld [vmem:[%s1 + $0x78] sm:$0xff]
    %v255 = vld [vmem:[%s1 + $0x80] sm:$0xff]
    %v256 = vld [vmem:[%s1 + $0x88] sm:$0xff]
    %v257 = vld [vmem:[%s1 + $0x90] sm:$0xff]
    %v258 = vld [vmem:[%s1 + $0x98] sm:$0xff]
    %v259 = vld [vmem:[%s1 + $0xa0] sm:$0xff]
    %v260 = vld [vmem:[%s1 + $0xa8] sm:$0xff]
    %v261 = vld [vmem:[%s1 + $0xb0] sm:$0xff]
    %v262 = vld [vmem:[%s1 + $0xb8] sm:$0xff]
    %v263 = vld [vmem:[%s1 + $0xc0] sm:$0xff]
    %v264 = vld [vmem:[%s1 + $0xc8] sm:$0xff]
    %v265 = vld [vmem:[%s1 + $0xd0] sm:$0xff]
    %v266 = vld [vmem:[%s1 + $0xd8] sm:$0xff]
    %v267 = vld [vmem:[%s1 + $0xe0] sm:$0xff]
    %v268 = vld [vmem:[%s1 + $0xe8] sm:$0xff]
    %v269 = vld [vmem:[%s1 + $0xf0] sm:$0xff]
    %v270 = vld [vmem:[%s1 + $0xf8] sm:$0xff]
    %v271 = vld [vmem:[%s1 + $0x100] sm:$0xff]
    %v272 = vld [vmem:[%s1 + $0x108] sm:$0xff]
    %v273 = vld [vmem:[%s1 + $0x110] sm:$0xff]
    %v274 = vld [vmem:[%s1 + $0x118] sm:$0xff]
    %v275 = vld [vmem:[%s1 + $0x120] sm:$0xff]
    %v276 = vld [vmem:[%s1 + $0x128] sm:$0xff]
    %v277 = vld [vmem:[%s1 + $0x130] sm:$0xff]
    %v278 = vld [vmem:[%s1 + $0x138] sm:$0xff]
    %v279 = vld [vmem:[%s2] sm:$0x3]
    %v281 = vperm.slane %v279, 0
    %v282 = vperm.slane %v279, 1
    %v286 = vsel %vm113, %v61, 0
    %v289 = vsel %vm113, %v62, 0
    %v292 = vsel %vm113, %v63, 0
    %v295 = vsel %vm113, %v238, 0
    %v297 = vsel %vm113, %v223, 0
    %v299 = vsel %vm113, %v227, 0
    %v301 = vsel %vm113, %v231, 0
    %303 = vmatpush.msra.mxu0 %v269
    %304 = vmatpush.msra.mxu0 %v267
    %305 = vmatpush.msra.mxu0 %v265
    %306 = vmatpush.msra.mxu0 %v263
    %307 = vmatpush.msra.mxu0 %v261
    %308 = vmatpush.msra.mxu0 %v259
    %309 = vmatpush.msra.mxu0 %v257
    %310 = vmatpush.msra.mxu0 %v255
    %311 = vmatpush.msra.mxu0 %v253
    %312 = vmatpush.msra.mxu0 %v251
    %313 = vmatpush.msra.mxu0 %v249
    %314 = vmatpush.msra.mxu0 %v247
    %315 = vmatpush.msra.mxu0 %v245
    %316 = vmatpush.msra.mxu0 %v243
    %317 = vmatpush.msra.mxu0 %v241
    %318 = vmatpush.msra.mxu0 %v239
    %319 = vmatmul.f32.gmra.mxu0 %v124
    %v320 = vpop.f32.mrf.mxu0
    %v321 = vadd.f32 %v281, %v320
    %322 = vmatmul.f32.gmra.mxu0 %v125
    %v323 = vpop.f32.mrf.mxu0
    %v324 = vadd.f32 %v281, %v323
    %325 = vmatmul.f32.gmra.mxu0 %v126
    %v326 = vpop.f32.mrf.mxu0
    %v327 = vadd.f32 %v281, %v326
    %328 = vmatmul.f32.gmra.mxu0 %v237
    %v329 = vpop.f32.mrf.mxu0
    %v330 = vadd.f32 %v281, %v329
    %331 = vmatmul.f32.gmra.mxu0 %v221
    %v332 = vpop.f32.mrf.mxu0
    %v333 = vadd.f32 %v281, %v332
    %334 = vmatmul.f32.gmra.mxu0 %v225
    %v335 = vpop.f32.mrf.mxu0
    %v336 = vadd.f32 %v281, %v335
    %337 = vmatmul.f32.gmra.mxu0 %v229
    %v338 = vpop.f32.mrf.mxu0
    %v339 = vadd.f32 %v281, %v338
    %340 = vdwg.mxu0
    %341 = vmatpush.msra.mxu0 0.0
    %342 = vmatpush.msra.mxu0 0.0
    %343 = vmatpush.msra.mxu0 0.0
    %344 = vmatpush.msra.mxu0 0.0
    %345 = vmatpush.msra.mxu0 0.0
    %346 = vmatpush.msra.mxu0 0.0
    %347 = vmatpush.msra.mxu0 0.0
    %348 = vmatpush.msra.mxu0 0.0
    %349 = vmatpush.msra.mxu0 0.0
    %350 = vmatpush.msra.mxu0 0.0
    %351 = vmatpush.msra.mxu0 0.0
    %352 = vmatpush.msra.mxu0 0.0
    %353 = vmatpush.msra.mxu0 %v277
    %354 = vmatpush.msra.mxu0 %v275
    %355 = vmatpush.msra.mxu0 %v273
    %356 = vmatpush.msra.mxu0 %v271
    %357 = vmatmul.f32.gmra.mxu0 %v286
    %v358 = vpop.f32.mrf.mxu0
    %v359 = vadd.f32 %v321, %v358
    %360 = vmatmul.f32.gmra.mxu0 %v289
    %v361 = vpop.f32.mrf.mxu0
    %v362 = vadd.f32 %v324, %v361
    %363 = vmatmul.f32.gmra.mxu0 %v292
    %v364 = vpop.f32.mrf.mxu0
    %v365 = vadd.f32 %v327, %v364
    %366 = vmatmul.f32.gmra.mxu0 %v295
    %v367 = vpop.f32.mrf.mxu0
    %v368 = vadd.f32 %v330, %v367
    %369 = vmatmul.f32.gmra.mxu0 %v297
    %v370 = vpop.f32.mrf.mxu0
    %v371 = vadd.f32 %v333, %v370
    %372 = vmatmul.f32.gmra.mxu0 %v299
    %v373 = vpop.f32.mrf.mxu0
    %v374 = vadd.f32 %v336, %v373
    %375 = vmatmul.f32.gmra.mxu0 %v301
    %v376 = vpop.f32.mrf.mxu0
    %v377 = vadd.f32 %v339, %v376
    %378 = vdwg.mxu0
    %379 = vmatpush.msra.mxu0 %v270
    %380 = vmatpush.msra.mxu0 %v268
    %381 = vmatpush.msra.mxu0 %v266
    %382 = vmatpush.msra.mxu0 %v264
    %383 = vmatpush.msra.mxu0 %v262
    %384 = vmatpush.msra.mxu0 %v260
    %385 = vmatpush.msra.mxu0 %v258
    %386 = vmatpush.msra.mxu0 %v256
    %387 = vmatpush.msra.mxu0 %v254
    %388 = vmatpush.msra.mxu0 %v252
    %389 = vmatpush.msra.mxu0 %v250
    %390 = vmatpush.msra.mxu0 %v248
    %391 = vmatpush.msra.mxu0 %v246
    %392 = vmatpush.msra.mxu0 %v244
    %393 = vmatpush.msra.mxu0 %v242
    %394 = vmatpush.msra.mxu0 %v240
    %395 = vmatmul.f32.gmra.mxu0 %v124
    %v396 = vpop.f32.mrf.mxu0
    %v397 = vadd.f32 %v282, %v396
    %398 = vmatmul.f32.gmra.mxu0 %v125
    %v399 = vpop.f32.mrf.mxu0
    %v400 = vadd.f32 %v282, %v399
    %401 = vmatmul.f32.gmra.mxu0 %v126
    %v402 = vpop.f32.mrf.mxu0
    %v403 = vadd.f32 %v282, %v402
    %404 = vmatmul.f32.gmra.mxu0 %v237
    %v405 = vpop.f32.mrf.mxu0
    %v406 = vadd.f32 %v282, %v405
    %407 = vmatmul.f32.gmra.mxu0 %v221
    %v408 = vpop.f32.mrf.mxu0
    %v409 = vadd.f32 %v282, %v408
    %410 = vmatmul.f32.gmra.mxu0 %v225
    %v411 = vpop.f32.mrf.mxu0
    %v412 = vadd.f32 %v282, %v411
    %413 = vmatmul.f32.gmra.mxu0 %v229
    %v414 = vpop.f32.mrf.mxu0
    %v415 = vadd.f32 %v282, %v414
    %416 = vdwg.mxu0
    %417 = vmatpush.msra.mxu0 0.0
    %418 = vmatpush.msra.mxu0 0.0
    %419 = vmatpush.msra.mxu0 0.0
    %420 = vmatpush.msra.mxu0 0.0
    %421 = vmatpush.msra.mxu0 0.0
    %422 = vmatpush.msra.mxu0 0.0
    %423 = vmatpush.msra.mxu0 0.0
    %424 = vmatpush.msra.mxu0 0.0
    %425 = vmatpush.msra.mxu0 0.0
    %426 = vmatpush.msra.mxu0 0.0
    %427 = vmatpush.msra.mxu0 0.0
    %428 = vmatpush.msra.mxu0 0.0
    %429 = vmatpush.msra.mxu0 %v278
    %430 = vmatpush.msra.mxu0 %v276
    %431 = vmatpush.msra.mxu0 %v274
    %432 = vmatpush.msra.mxu0 %v272
    %433 = vmatmul.f32.gmra.mxu0 %v286
    %v434 = vpop.f32.mrf.mxu0
    %v435 = vadd.f32 %v397, %v434
    %436 = vmatmul.f32.gmra.mxu0 %v289
    %v437 = vpop.f32.mrf.mxu0
    %v438 = vadd.f32 %v400, %v437
    %439 = vmatmul.f32.gmra.mxu0 %v292
    %v440 = vpop.f32.mrf.mxu0
    %v441 = vadd.f32 %v403, %v440
    %442 = vmatmul.f32.gmra.mxu0 %v295
    %v443 = vpop.f32.mrf.mxu0
    %v444 = vadd.f32 %v406, %v443
    %445 = vmatmul.f32.gmra.mxu0 %v297
    %v446 = vpop.f32.mrf.mxu0
    %v447 = vadd.f32 %v409, %v446
    %448 = vmatmul.f32.gmra.mxu0 %v299
    %v449 = vpop.f32.mrf.mxu0
    %v450 = vadd.f32 %v412, %v449
    %451 = vmatmul.f32.gmra.mxu0 %v301
    %v452 = vpop.f32.mrf.mxu0
    %v453 = vadd.f32 %v415, %v452
    %454 = vdwg.mxu0
    %v455 = vmax.f32 %v359, 0.0
    %v456 = vmax.f32 %v435, 0.0
    %v457 = vmax.f32 %v362, 0.0
    %v458 = vmax.f32 %v438, 0.0
    %v459 = vmax.f32 %v365, 0.0
    %v460 = vmax.f32 %v441, 0.0
    %v461 = vmax.f32 %v368, 0.0
    %v462 = vmax.f32 %v444, 0.0
    %v463 = vmax.f32 %v371, 0.0
    %v464 = vmax.f32 %v447, 0.0
    %v465 = vmax.f32 %v374, 0.0
    %v466 = vmax.f32 %v450, 0.0
    %v467 = vmax.f32 %v377, 0.0
    %v468 = vmax.f32 %v453, 0.0
    %v469 = vld [vmem:[%s3] sm:$0xff]
    %v470 = vld [vmem:[%s3 + $0x8] sm:$0xff]
    %v471 = vld [vmem:[%s3 + $0x10] sm:$0xff]
    %v472 = vld [vmem:[%s3 + $0x18] sm:$0xf]
    %vm473 = vcmask 457728
    %v475 = vsel %vm473, %v469, 0
    %v478 = vsel %vm473, %v470, 0
    %v481 = vsel %vm473, %v471, 0
    %v484 = vsel %vm473, %v472, 0
    %486 = vmatpush.msra.mxu0 0.0
    %487 = vmatpush.msra.mxu0 0.0
    %488 = vmatpush.msra.mxu0 0.0
    %489 = vmatpush.msra.mxu0 0.0
    %490 = vmatpush.msra.mxu0 0.0
    %491 = vmatpush.msra.mxu0 0.0
    %492 = vmatpush.msra.mxu0 0.0
    %493 = vmatpush.msra.mxu0 0.0
    %494 = vmatpush.msra.mxu0 0.0
    %495 = vmatpush.msra.mxu0 %v467
    %496 = vmatpush.msra.mxu0 %v465
    %497 = vmatpush.msra.mxu0 %v463
    %498 = vmatpush.msra.mxu0 %v461
    %499 = vmatpush.msra.mxu0 %v459
    %500 = vmatpush.msra.mxu0 %v457
    %501 = vmatpush.msra.mxu0 %v455
    %502 = vmatmul.f32.gmra.mxu0 %v475
    %v503 = vpop.f32.mrf.mxu0
    %v504 = vadd.f32 0.0, %v503
    %505 = vmatmul.f32.gmra.mxu0 %v478
    %v506 = vpop.f32.mrf.mxu0
    %v507 = vadd.f32 0.0, %v506
    %508 = vmatmul.f32.gmra.mxu0 %v481
    %v509 = vpop.f32.mrf.mxu0
    %v510 = vadd.f32 0.0, %v509
    %511 = vmatmul.f32.gmra.mxu0 %v484
    %v512 = vpop.f32.mrf.mxu0
    %v513 = vadd.f32 0.0, %v512
    %514 = vdwg.mxu0
    %515 = vmatpush.msra.mxu0 0.0
    %516 = vmatpush.msra.mxu0 0.0
    %517 = vmatpush.msra.mxu0 0.0
    %518 = vmatpush.msra.mxu0 0.0
    %519 = vmatpush.msra.mxu0 0.0
    %520 = vmatpush.msra.mxu0 0.0
    %521 = vmatpush.msra.mxu0 0.0
    %522 = vmatpush.msra.mxu0 0.0
    %523 = vmatpush.msra.mxu0 0.0
    %524 = vmatpush.msra.mxu0 %v468
    %525 = vmatpush.msra.mxu0 %v466
    %526 = vmatpush.msra.mxu0 %v464
    %527 = vmatpush.msra.mxu0 %v462
    %528 = vmatpush.msra.mxu0 %v460
    %529 = vmatpush.msra.mxu0 %v458
    %530 = vmatpush.msra.mxu0 %v456
    %531 = vmatmul.f32.gmra.mxu0 %v475
    %v532 = vpop.f32.mrf.mxu0
    %v533 = vadd.f32 0.0, %v532
    %534 = vmatmul.f32.gmra.mxu0 %v478
    %v535 = vpop.f32.mrf.mxu0
    %v536 = vadd.f32 0.0, %v535
    %537 = vmatmul.f32.gmra.mxu0 %v481
    %v538 = vpop.f32.mrf.mxu0
    %v539 = vadd.f32 0.0, %v538
    %540 = vmatmul.f32.gmra.mxu0 %v484
    %v541 = vpop.f32.mrf.mxu0
    %v542 = vadd.f32 0.0, %v541
    %543 = vdwg.mxu0
    %vm548 = vcmask 1046528
    %v549 = vrot.slane %v504, 1
    %v550 = vrot.slane %v507, 1
    %v551 = vsel %vm548, %v549, %v550
    %v552 = vrot.slane %v533, 1
    %v553 = vrot.slane %v536, 1
    %v554 = vsel %vm548, %v552, %v553
    %555 = vrot.lane.b32.xlu0 %v551, 40
    %v556 = vpop.permute.xlu0 %555
    %557 = vrot.lane.b32.xlu0 %v554, 40
    %v558 = vpop.permute.xlu0 %557
    %559 = vrot.lane.b32.xlu0 %v550, 40
    %v560 = vpop.permute.xlu0 %559
    %561 = vrot.lane.b32.xlu0 %v553, 40
    %v562 = vpop.permute.xlu0 %561
    %vm563 = vcmask 326656
    %v564 = vsel %vm563, %v556, %v558
    %v565 = vsel %vm563, %v560, %v562
    %vm570 = vcmask 1045504
    %v571 = vrot.slane %v504, 2
    %v572 = vrot.slane %v507, 2
    %v573 = vsel %vm570, %v571, %v572
    %v574 = vrot.slane %v533, 2
    %v575 = vrot.slane %v536, 2
    %v576 = vsel %vm570, %v574, %v575
    %577 = vrot.lane.b32.xlu0 %v573, 80
    %v578 = vpop.permute.xlu0 %577
    %579 = vrot.lane.b32.xlu0 %v576, 80
    %v580 = vpop.permute.xlu0 %579
    %581 = vrot.lane.b32.xlu0 %v572, 80
    %v582 = vpop.permute.xlu0 %581
    %583 = vrot.lane.b32.xlu0 %v575, 80
    %v584 = vpop.permute.xlu0 %583
    %vm585 = vcmask 654336
    %v586 = vsel %vm585, %v578, %v580
    %v587 = vsel %vm585, %v582, %v584
    %vm592 = vcmask 1044480
    %v593 = vrot.slane %v504, 3
    %v594 = vrot.slane %v507, 3
    %v595 = vsel %vm592, %v593, %v594
    %v596 = vrot.slane %v533, 3
    %v597 = vrot.slane %v536, 3
    %v598 = vsel %vm592, %v596, %v597
    %599 = vrot.lane.b32.xlu0 %v595, 120
    %v600 = vpop.permute.xlu0 %599
    %601 = vrot.lane.b32.xlu0 %v598, 120
    %v602 = vpop.permute.xlu0 %601
    %603 = vrot.lane.b32.xlu0 %v594, 120
    %v604 = vpop.permute.xlu0 %603
    %605 = vrot.lane.b32.xlu0 %v597, 120
    %v606 = vpop.permute.xlu0 %605
    %vm607 = vcmask 982016
    %v608 = vsel %vm607, %v600, %v602
    %v609 = vsel %vm607, %v604, %v606
    %v616 = vrot.slane %v504, 4
    %v617 = vrot.slane %v507, 4
    %v618 = vsel %vm217, %v616, %v617
    %v619 = vrot.slane %v533, 4
    %v620 = vrot.slane %v536, 4
    %v621 = vsel %vm217, %v619, %v620
    %622 = vrot.lane.b32.xlu0 %v618, 32
    %v623 = vpop.permute.xlu0 %622
    %624 = vrot.lane.b32.xlu0 %v621, 32
    %v625 = vpop.permute.xlu0 %624
    %626 = vrot.lane.b32.xlu0 %v617, 32
    %v627 = vpop.permute.xlu0 %626
    %628 = vrot.lane.b32.xlu0 %v620, 32
    %v629 = vpop.permute.xlu0 %628
    %v630 = vsel %vm113, %v623, %v625
    %v631 = vsel %vm113, %v627, %v629
    %v635 = vsel %vm563, %v533, %v556
    %v636 = vsel %vm563, %v536, %v560
    %v637 = vsel %vm585, %v564, %v578
    %v638 = vsel %vm585, %v565, %v582
    %v639 = vsel %vm607, %v586, %v600
    %v640 = vsel %vm607, %v587, %v604
    %v641 = vsel %vm113, %v602, %v623
    %v642 = vsel %vm113, %v606, %v627
    %v647 = vrot.slane %v510, 1
    %v648 = vsel %vm548, %v550, %v647
    %v649 = vrot.slane %v539, 1
    %v650 = vsel %vm548, %v553, %v649
    %v651 = vrot.slane %v513, 1
    %v652 = vsel %vm548, %v647, %v651
    %v653 = vrot.slane %v542, 1
    %v654 = vsel %vm548, %v649, %v653
    %655 = vrot.lane.b32.xlu0 %v648, 40
    %v656 = vpop.permute.xlu0 %655
    %657 = vrot.lane.b32.xlu0 %v650, 40
    %v658 = vpop.permute.xlu0 %657
    %659 = vrot.lane.b32.xlu0 %v652, 40
    %v660 = vpop.permute.xlu0 %659
    %661 = vrot.lane.b32.xlu0 %v654, 40
    %v662 = vpop.permute.xlu0 %661
    %v663 = vsel %vm563, %v656, %v658
    %v664 = vsel %vm563, %v660, %v662
    %v669 = vrot.slane %v510, 2
    %v670 = vrot.slane %v539, 2
    %v671 = vrot.slane %v513, 2
    %v672 = vsel %vm570, %v669, %v671
    %v673 = vrot.slane %v542, 2
    %v674 = vsel %vm570, %v670, %v673
    %675 = vrot.lane.b32.xlu0 %v669, 80
    %v676 = vpop.permute.xlu0 %675
    %677 = vrot.lane.b32.xlu0 %v670, 80
    %v678 = vpop.permute.xlu0 %677
    %679 = vrot.lane.b32.xlu0 %v672, 80
    %v680 = vpop.permute.xlu0 %679
    %681 = vrot.lane.b32.xlu0 %v674, 80
    %v682 = vpop.permute.xlu0 %681
    %v683 = vsel %vm585, %v676, %v678
    %v684 = vsel %vm585, %v680, %v682
    %v689 = vrot.slane %v510, 3
    %v690 = vrot.slane %v539, 3
    %v691 = vrot.slane %v513, 3
    %v692 = vsel %vm592, %v689, %v691
    %v693 = vrot.slane %v542, 3
    %v694 = vsel %vm592, %v690, %v693
    %695 = vrot.lane.b32.xlu0 %v689, 120
    %v696 = vpop.permute.xlu0 %695
    %697 = vrot.lane.b32.xlu0 %v690, 120
    %v698 = vpop.permute.xlu0 %697
    %699 = vrot.lane.b32.xlu0 %v692, 120
    %v700 = vpop.permute.xlu0 %699
    %701 = vrot.lane.b32.xlu0 %v694, 120
    %v702 = vpop.permute.xlu0 %701
    %v703 = vsel %vm607, %v696, %v698
    %v704 = vsel %vm607, %v700, %v702
    %v709 = vrot.slane %v510, 4
    %v710 = vrot.slane %v539, 4
    %v711 = vrot.slane %v513, 4
    %v712 = vsel %vm217, %v709, %v711
    %v713 = vrot.slane %v542, 4
    %v714 = vsel %vm217, %v710, %v713
    %715 = vrot.lane.b32.xlu0 %v709, 32
    %v716 = vpop.permute.xlu0 %715
    %717 = vrot.lane.b32.xlu0 %v710, 32
    %v718 = vpop.permute.xlu0 %717
    %719 = vrot.lane.b32.xlu0 %v712, 32
    %v720 = vpop.permute.xlu0 %719
    %721 = vrot.lane.b32.xlu0 %v714, 32
    %v722 = vpop.permute.xlu0 %721
    %v723 = vsel %vm113, %v716, %v718
    %v724 = vsel %vm113, %v720, %v722
    %v727 = vsel %vm563, %v536, %v656
    %v728 = vsel %vm563, %v539, %v660
    %v729 = vsel %vm585, %v663, %v676
    %v730 = vsel %vm585, %v664, %v680
    %v731 = vsel %vm607, %v683, %v696
    %v732 = vsel %vm607, %v684, %v700
    %v733 = vsel %vm113, %v698, %v716
    %v734 = vsel %vm113, %v702, %v720
    %v743 = vsel %vm217, %v617, %v709
    %v744 = vrot.slane %v727, 4
    %v745 = vrot.slane %v728, 4
    %v746 = vsel %vm217, %v744, %v745
    %v747 = vrot.slane %v729, 4
    %v748 = vrot.slane %v730, 4
    %v749 = vsel %vm217, %v747, %v748
    %v750 = vrot.slane %v731, 4
    %v751 = vrot.slane %v732, 4
    %v752 = vsel %vm217, %v750, %v751
    %v753 = vrot.slane %v703, 4
    %v754 = vrot.slane %v704, 4
    %v755 = vsel %vm217, %v753, %v754
    %v756 = vrot.slane %v733, 4
    %v757 = vrot.slane %v734, 4
    %v758 = vsel %vm217, %v756, %v757
    %v759 = vrot.slane %v723, 4
    %v760 = vrot.slane %v724, 4
    %v761 = vsel %vm217, %v759, %v760
    %vm775 = vcmask 1041408
    %v776 = vsel %vm775, %v507, %v743
    %v777 = vsel %vm775, %v636, %v746
    %v778 = vsel %vm775, %v638, %v749
    %v779 = vsel %vm775, %v640, %v752
    %v780 = vsel %vm775, %v609, %v755
    %v781 = vsel %vm775, %v642, %v758
    %v782 = vsel %vm775, %v631, %v761
    %v783 = vld [vmem:[%s4] sm:$0xff]
    %v784 = vld [vmem:[%s4 + $0x8] sm:$0xff]
    %v785 = vld [vmem:[%s4 + $0x10] sm:$0xff]
    %v786 = vld [vmem:[%s4 + $0x18] sm:$0xff]
    %v787 = vld [vmem:[%s4 + $0x20] sm:$0xff]
    %v788 = vld [vmem:[%s4 + $0x28] sm:$0xff]
    %v789 = vld [vmem:[%s4 + $0x30] sm:$0xff]
    %v790 = vld [vmem:[%s4 + $0x38] sm:$0xff]
    %v791 = vld [vmem:[%s4 + $0x40] sm:$0xff]
    %v792 = vld [vmem:[%s4 + $0x48] sm:$0xff]
    %v793 = vld [vmem:[%s4 + $0x50] sm:$0xff]
    %v794 = vld [vmem:[%s4 + $0x58] sm:$0xff]
    %v795 = vld [vmem:[%s4 + $0x60] sm:$0xff]
    %v796 = vld [vmem:[%s4 + $0x68] sm:$0xff]
    %v797 = vld [vmem:[%s4 + $0x70] sm:$0xff]
    %v798 = vld [vmem:[%s4 + $0x78] sm:$0xff]
    %v799 = vld [vmem:[%s4 + $0x80] sm:$0xff]
    %v800 = vld [vmem:[%s4 + $0x88] sm:$0xff]
    %v801 = vld [vmem:[%s4 + $0x90] sm:$0xff]
    %v802 = vld [vmem:[%s4 + $0x98] sm:$0xff]
    %v803 = vld [vmem:[%s4 + $0xa0] sm:$0xff]
    %v804 = vld [vmem:[%s4 + $0xa8] sm:$0xff]
    %v805 = vld [vmem:[%s4 + $0xb0] sm:$0xff]
    %v806 = vld [vmem:[%s4 + $0xb8] sm:$0xff]
    %v807 = vld [vmem:[%s4 + $0xc0] sm:$0xff]
    %v808 = vld [vmem:[%s4 + $0xc8] sm:$0xff]
    %v809 = vld [vmem:[%s4 + $0xd0] sm:$0xff]
    %v810 = vld [vmem:[%s4 + $0xd8] sm:$0xff]
    %v811 = vld [vmem:[%s4 + $0xe0] sm:$0xff]
    %v812 = vld [vmem:[%s4 + $0xe8] sm:$0xff]
    %v813 = vld [vmem:[%s4 + $0xf0] sm:$0xff]
    %v814 = vld [vmem:[%s4 + $0xf8] sm:$0xff]
    %v815 = vld [vmem:[%s4 + $0x100] sm:$0xff]
    %v816 = vld [vmem:[%s4 + $0x108] sm:$0xff]
    %v817 = vld [vmem:[%s4 + $0x110] sm:$0xff]
    %v818 = vld [vmem:[%s4 + $0x118] sm:$0xff]
    %v819 = vld [vmem:[%s4 + $0x120] sm:$0xff]
    %v820 = vld [vmem:[%s4 + $0x128] sm:$0xff]
    %v821 = vld [vmem:[%s4 + $0x130] sm:$0xff]
    %v822 = vld [vmem:[%s4 + $0x138] sm:$0xff]
    %v823 = vld [vmem:[%s4 + $0x140] sm:$0xff]
    %v824 = vld [vmem:[%s4 + $0x148] sm:$0xff]
    %v825 = vld [vmem:[%s4 + $0x150] sm:$0xff]
    %v826 = vld [vmem:[%s4 + $0x158] sm:$0xff]
    %v827 = vld [vmem:[%s4 + $0x160] sm:$0xff]
    %v828 = vld [vmem:[%s4 + $0x168] sm:$0xff]
    %v829 = vld [vmem:[%s4 + $0x170] sm:$0xff]
    %v830 = vld [vmem:[%s4 + $0x178] sm:$0xff]
    %v831 = vld [vmem:[%s4 + $0x180] sm:$0xff]
    %v832 = vld [vmem:[%s4 + $0x188] sm:$0xff]
    %v833 = vld [vmem:[%s4 + $0x190] sm:$0xff]
    %v834 = vld [vmem:[%s4 + $0x198] sm:$0xff]
    %v835 = vld [vmem:[%s4 + $0x1a0] sm:$0xff]
    %v836 = vld [vmem:[%s4 + $0x1a8] sm:$0xff]
    %v837 = vld [vmem:[%s4 + $0x1b0] sm:$0xff]
    %v838 = vld [vmem:[%s4 + $0x1b8] sm:$0xff]
    %v839 = vld [vmem:[%s4 + $0x1c0] sm:$0xff]
    %v840 = vld [vmem:[%s4 + $0x1c8] sm:$0xff]
    %v841 = vld [vmem:[%s4 + $0x1d0] sm:$0xff]
    %v842 = vld [vmem:[%s4 + $0x1d8] sm:$0xff]
    %v843 = vld [vmem:[%s4 + $0x1e0] sm:$0xff]
    %v844 = vld [vmem:[%s4 + $0x1e8] sm:$0xff]
    %v845 = vld [vmem:[%s4 + $0x1f0] sm:$0xff]
    %v846 = vld [vmem:[%s4 + $0x1f8] sm:$0xff]
    %v847 = vld [vmem:[%s4 + $0x200] sm:$0xff]
    %v848 = vld [vmem:[%s4 + $0x208] sm:$0xff]
    %v849 = vld [vmem:[%s4 + $0x210] sm:$0xff]
    %v850 = vld [vmem:[%s4 + $0x218] sm:$0xff]
    %v851 = vld [vmem:[%s4 + $0x220] sm:$0xff]
    %v852 = vld [vmem:[%s4 + $0x228] sm:$0xff]
    %v853 = vld [vmem:[%s4 + $0x230] sm:$0xff]
    %v854 = vld [vmem:[%s4 + $0x238] sm:$0xff]
    %v855 = vld [vmem:[%s4 + $0x240] sm:$0xff]
    %v856 = vld [vmem:[%s4 + $0x248] sm:$0xff]
    %v857 = vld [vmem:[%s4 + $0x250] sm:$0xff]
    %v858 = vld [vmem:[%s4 + $0x258] sm:$0xff]
    %v859 = vld [vmem:[%s4 + $0x260] sm:$0xff]
    %v860 = vld [vmem:[%s4 + $0x268] sm:$0xff]
    %v861 = vld [vmem:[%s4 + $0x270] sm:$0xff]
    %v862 = vld [vmem:[%s4 + $0x278] sm:$0xff]
    %v863 = vld [vmem:[%s4 + $0x280] sm:$0xff]
    %v864 = vld [vmem:[%s4 + $0x288] sm:$0xff]
    %v865 = vld [vmem:[%s4 + $0x290] sm:$0xff]
    %v866 = vld [vmem:[%s4 + $0x298] sm:$0xff]
    %v867 = vld [vmem:[%s4 + $0x2a0] sm:$0xff]
    %v868 = vld [vmem:[%s4 + $0x2a8] sm:$0xff]
    %v869 = vld [vmem:[%s4 + $0x2b0] sm:$0xff]
    %v870 = vld [vmem:[%s4 + $0x2b8] sm:$0xff]
    %v871 = vld [vmem:[%s4 + $0x2c0] sm:$0xff]
    %v872 = vld [vmem:[%s4 + $0x2c8] sm:$0xff]
    %v873 = vld [vmem:[%s4 + $0x2d0] sm:$0xff]
    %v874 = vld [vmem:[%s4 + $0x2d8] sm:$0xff]
    %v875 = vld [vmem:[%s4 + $0x2e0] sm:$0xff]
    %v876 = vld [vmem:[%s4 + $0x2e8] sm:$0xff]
    %v877 = vld [vmem:[%s4 + $0x2f0] sm:$0xff]
    %v878 = vld [vmem:[%s4 + $0x2f8] sm:$0xff]
    %v879 = vld [vmem:[%s4 + $0x300] sm:$0xff]
    %v880 = vld [vmem:[%s4 + $0x308] sm:$0xff]
    %v881 = vld [vmem:[%s4 + $0x310] sm:$0xff]
    %v882 = vld [vmem:[%s4 + $0x318] sm:$0xff]
    %v883 = vld [vmem:[%s4 + $0x320] sm:$0xff]
    %v884 = vld [vmem:[%s4 + $0x328] sm:$0xff]
    %v885 = vld [vmem:[%s4 + $0x330] sm:$0xff]
    %v886 = vld [vmem:[%s4 + $0x338] sm:$0xff]
    %v887 = vld [vmem:[%s4 + $0x340] sm:$0xff]
    %v888 = vld [vmem:[%s4 + $0x348] sm:$0xff]
    %v889 = vld [vmem:[%s4 + $0x350] sm:$0xff]
    %v890 = vld [vmem:[%s4 + $0x358] sm:$0xff]
    %v891 = vld [vmem:[%s4 + $0x360] sm:$0xff]
    %v892 = vld [vmem:[%s4 + $0x368] sm:$0xff]
    %v893 = vld [vmem:[%s4 + $0x370] sm:$0xff]
    %v894 = vld [vmem:[%s4 + $0x378] sm:$0xff]
    %v895 = vld [vmem:[%s4 + $0x380] sm:$0xff]
    %v896 = vld [vmem:[%s4 + $0x388] sm:$0xff]
    %v897 = vld [vmem:[%s4 + $0x390] sm:$0xff]
    %v898 = vld [vmem:[%s4 + $0x398] sm:$0xff]
    %v899 = vld [vmem:[%s4 + $0x3a0] sm:$0xff]
    %v900 = vld [vmem:[%s4 + $0x3a8] sm:$0xff]
    %v901 = vld [vmem:[%s4 + $0x3b0] sm:$0xff]
    %v902 = vld [vmem:[%s4 + $0x3b8] sm:$0xff]
    %v903 = vld [vmem:[%s4 + $0x3c0] sm:$0xff]
    %v904 = vld [vmem:[%s4 + $0x3c8] sm:$0xff]
    %v905 = vld [vmem:[%s4 + $0x3d0] sm:$0xff]
    %v906 = vld [vmem:[%s4 + $0x3d8] sm:$0xff]
    %v907 = vld [vmem:[%s4 + $0x3e0] sm:$0xff]
    %v908 = vld [vmem:[%s4 + $0x3e8] sm:$0xff]
    %v909 = vld [vmem:[%s4 + $0x3f0] sm:$0xff]
    %v910 = vld [vmem:[%s4 + $0x3f8] sm:$0xff]
    %v911 = vld [vmem:[%s4 + $0x400] sm:$0xff]
    %v912 = vld [vmem:[%s4 + $0x408] sm:$0xff]
    %v913 = vld [vmem:[%s4 + $0x410] sm:$0xff]
    %v914 = vld [vmem:[%s4 + $0x418] sm:$0xff]
    %v915 = vld [vmem:[%s4 + $0x420] sm:$0xff]
    %v916 = vld [vmem:[%s4 + $0x428] sm:$0xff]
    %v917 = vld [vmem:[%s4 + $0x430] sm:$0xff]
    %v918 = vld [vmem:[%s4 + $0x438] sm:$0xff]
    %v919 = vld [vmem:[%s4 + $0x440] sm:$0xff]
    %v920 = vld [vmem:[%s4 + $0x448] sm:$0xff]
    %v921 = vld [vmem:[%s4 + $0x450] sm:$0xff]
    %v922 = vld [vmem:[%s4 + $0x458] sm:$0xff]
    %v923 = vld [vmem:[%s4 + $0x460] sm:$0xff]
    %v924 = vld [vmem:[%s4 + $0x468] sm:$0xff]
    %v925 = vld [vmem:[%s4 + $0x470] sm:$0xff]
    %v926 = vld [vmem:[%s4 + $0x478] sm:$0xff]
    %v927 = vld [vmem:[%s4 + $0x480] sm:$0xff]
    %v928 = vld [vmem:[%s4 + $0x488] sm:$0xff]
    %v929 = vld [vmem:[%s4 + $0x490] sm:$0xff]
    %v930 = vld [vmem:[%s4 + $0x498] sm:$0xff]
    %v931 = vld [vmem:[%s4 + $0x4a0] sm:$0xff]
    %v932 = vld [vmem:[%s4 + $0x4a8] sm:$0xff]
    %v933 = vld [vmem:[%s4 + $0x4b0] sm:$0xff]
    %v934 = vld [vmem:[%s4 + $0x4b8] sm:$0xff]
    %v935 = vld [vmem:[%s4 + $0x4c0] sm:$0xff]
    %v936 = vld [vmem:[%s4 + $0x4c8] sm:$0xff]
    %v937 = vld [vmem:[%s4 + $0x4d0] sm:$0xff]
    %v938 = vld [vmem:[%s4 + $0x4d8] sm:$0xff]
    %v939 = vld [vmem:[%s4 + $0x4e0] sm:$0xff]
    %v940 = vld [vmem:[%s4 + $0x4e8] sm:$0xff]
    %v941 = vld [vmem:[%s4 + $0x4f0] sm:$0xff]
    %v942 = vld [vmem:[%s4 + $0x4f8] sm:$0xff]
    %v943 = vld [vmem:[%s4 + $0x500] sm:$0xff]
    %v944 = vld [vmem:[%s4 + $0x508] sm:$0xff]
    %v945 = vld [vmem:[%s4 + $0x510] sm:$0xff]
    %v946 = vld [vmem:[%s4 + $0x518] sm:$0xff]
    %v947 = vld [vmem:[%s4 + $0x520] sm:$0xff]
    %v948 = vld [vmem:[%s4 + $0x528] sm:$0xff]
    %v949 = vld [vmem:[%s4 + $0x530] sm:$0xff]
    %v950 = vld [vmem:[%s4 + $0x538] sm:$0xff]
    %v951 = vld [vmem:[%s4 + $0x540] sm:$0xff]
    %v952 = vld [vmem:[%s4 + $0x548] sm:$0xff]
    %v953 = vld [vmem:[%s4 + $0x550] sm:$0xff]
    %v954 = vld [vmem:[%s4 + $0x558] sm:$0xff]
    %v955 = vld [vmem:[%s4 + $0x560] sm:$0xff]
    %v956 = vld [vmem:[%s4 + $0x568] sm:$0xff]
    %v957 = vld [vmem:[%s4 + $0x570] sm:$0xff]
    %v958 = vld [vmem:[%s4 + $0x578] sm:$0xff]
    %v959 = vld [vmem:[%s4 + $0x580] sm:$0xff]
    %v960 = vld [vmem:[%s4 + $0x588] sm:$0xff]
    %v961 = vld [vmem:[%s4 + $0x590] sm:$0xff]
    %v962 = vld [vmem:[%s4 + $0x598] sm:$0xff]
    %v963 = vld [vmem:[%s4 + $0x5a0] sm:$0xff]
    %v964 = vld [vmem:[%s4 + $0x5a8] sm:$0xff]
    %v965 = vld [vmem:[%s4 + $0x5b0] sm:$0xff]
    %v966 = vld [vmem:[%s4 + $0x5b8] sm:$0xff]
    %v967 = vld [vmem:[%s4 + $0x5c0] sm:$0xff]
    %v968 = vld [vmem:[%s4 + $0x5c8] sm:$0xff]
    %v969 = vld [vmem:[%s4 + $0x5d0] sm:$0xff]
    %v970 = vld [vmem:[%s4 + $0x5d8] sm:$0xff]
    %v971 = vld [vmem:[%s4 + $0x5e0] sm:$0xff]
    %v972 = vld [vmem:[%s4 + $0x5e8] sm:$0xff]
    %v973 = vld [vmem:[%s4 + $0x5f0] sm:$0xff]
    %v974 = vld [vmem:[%s4 + $0x5f8] sm:$0xff]
    %v975 = vld [vmem:[%s4 + $0x600] sm:$0xff]
    %v976 = vld [vmem:[%s4 + $0x608] sm:$0xff]
    %v977 = vld [vmem:[%s4 + $0x610] sm:$0xff]
    %v978 = vld [vmem:[%s4 + $0x618] sm:$0xff]
    %v979 = vld [vmem:[%s4 + $0x620] sm:$0xff]
    %v980 = vld [vmem:[%s4 + $0x628] sm:$0xff]
    %v981 = vld [vmem:[%s4 + $0x630] sm:$0xff]
    %v982 = vld [vmem:[%s4 + $0x638] sm:$0xff]
    %v983 = vld [vmem:[%s4 + $0x640] sm:$0xff]
    %v984 = vld [vmem:[%s4 + $0x648] sm:$0xff]
    %v985 = vld [vmem:[%s4 + $0x650] sm:$0xff]
    %v986 = vld [vmem:[%s4 + $0x658] sm:$0xff]
    %v987 = vld [vmem:[%s4 + $0x660] sm:$0xff]
    %v988 = vld [vmem:[%s4 + $0x668] sm:$0xff]
    %v989 = vld [vmem:[%s4 + $0x670] sm:$0xff]
    %v990 = vld [vmem:[%s4 + $0x678] sm:$0xff]
    %v991 = vld [vmem:[%s4 + $0x680] sm:$0xff]
    %v992 = vld [vmem:[%s4 + $0x688] sm:$0xff]
    %v993 = vld [vmem:[%s5] sm:$0x3]
    %v995 = vperm.slane %v993, 0
    %v996 = vperm.slane %v993, 1
    %vm999 = vcmask 588800
    %v1000 = vsel %vm999, %v630, 0
    %v1003 = vsel %vm999, %v782, 0
    %v1005 = vsel %vm999, %v760, 0
    %1007 = vmatpush.msra.mxu0 %v813
    %1008 = vmatpush.msra.mxu0 %v811
    %1009 = vmatpush.msra.mxu0 %v809
    %1010 = vmatpush.msra.mxu0 %v807
    %1011 = vmatpush.msra.mxu0 %v805
    %1012 = vmatpush.msra.mxu0 %v803
    %1013 = vmatpush.msra.mxu0 %v801
    %1014 = vmatpush.msra.mxu0 %v799
    %1015 = vmatpush.msra.mxu0 %v797
    %1016 = vmatpush.msra.mxu0 %v795
    %1017 = vmatpush.msra.mxu0 %v793
    %1018 = vmatpush.msra.mxu0 %v791
    %1019 = vmatpush.msra.mxu0 %v789
    %1020 = vmatpush.msra.mxu0 %v787
    %1021 = vmatpush.msra.mxu0 %v785
    %1022 = vmatpush.msra.mxu0 %v783
    %1023 = vmatmul.f32.gmra.mxu0 %v504
    %v1024 = vpop.f32.mrf.mxu0
    %v1025 = vadd.f32 %v995, %v1024
    %1026 = vmatmul.f32.gmra.mxu0 %v776
    %v1027 = vpop.f32.mrf.mxu0
    %v1028 = vadd.f32 %v995, %v1027
    %1029 = vmatmul.f32.gmra.mxu0 %v709
    %v1030 = vpop.f32.mrf.mxu0
    %v1031 = vadd.f32 %v995, %v1030
    %1032 = vdwg.mxu0
    %1033 = vmatpush.msra.mxu0 %v845
    %1034 = vmatpush.msra.mxu0 %v843
    %1035 = vmatpush.msra.mxu0 %v841
    %1036 = vmatpush.msra.mxu0 %v839
    %1037 = vmatpush.msra.mxu0 %v837
    %1038 = vmatpush.msra.mxu0 %v835
    %1039 = vmatpush.msra.mxu0 %v833
    %1040 = vmatpush.msra.mxu0 %v831
    %1041 = vmatpush.msra.mxu0 %v829
    %1042 = vmatpush.msra.mxu0 %v827
    %1043 = vmatpush.msra.mxu0 %v825
    %1044 = vmatpush.msra.mxu0 %v823
    %1045 = vmatpush.msra.mxu0 %v821
    %1046 = vmatpush.msra.mxu0 %v819
    %1047 = vmatpush.msra.mxu0 %v817
    %1048 = vmatpush.msra.mxu0 %v815
    %1049 = vmatmul.f32.gmra.mxu0 %v635
    %v1050 = vpop.f32.mrf.mxu0
    %v1051 = vadd.f32 %v1025, %v1050
    %1052 = vmatmul.f32.gmra.mxu0 %v777
    %v1053 = vpop.f32.mrf.mxu0
    %v1054 = vadd.f32 %v1028, %v1053
    %1055 = vmatmul.f32.gmra.mxu0 %v745
    %v1056 = vpop.f32.mrf.mxu0
    %v1057 = vadd.f32 %v1031, %v1056
    %1058 = vdwg.mxu0
    %1059 = vmatpush.msra.mxu0 %v877
    %1060 = vmatpush.msra.mxu0 %v875
    %1061 = vmatpush.msra.mxu0 %v873
    %1062 = vmatpush.msra.mxu0 %v871
    %1063 = vmatpush.msra.mxu0 %v869
    %1064 = vmatpush.msra.mxu0 %v867
    %1065 = vmatpush.msra.mxu0 %v865
    %1066 = vmatpush.msra.mxu0 %v863
    %1067 = vmatpush.msra.mxu0 %v861
    %1068 = vmatpush.msra.mxu0 %v859
    %1069 = vmatpush.msra.mxu0 %v857
    %1070 = vmatpush.msra.mxu0 %v855
    %1071 = vmatpush.msra.mxu0 %v853
    %1072 = vmatpush.msra.mxu0 %v851
    %1073 = vmatpush.msra.mxu0 %v849
    %1074 = vmatpush.msra.mxu0 %v847
    %1075 = vmatmul.f32.gmra.mxu0 %v637
    %v1076 = vpop.f32.mrf.mxu0
    %v1077 = vadd.f32 %v1051, %v1076
    %1078 = vmatmul.f32.gmra.mxu0 %v778
    %v1079 = vpop.f32.mrf.mxu0
    %v1080 = vadd.f32 %v1054, %v1079
    %1081 = vmatmul.f32.gmra.mxu0 %v748
    %v1082 = vpop.f32.mrf.mxu0
    %v1083 = vadd.f32 %v1057, %v1082
    %1084 = vdwg.mxu0
    %1085 = vmatpush.msra.mxu0 %v909
    %1086 = vmatpush.msra.mxu0 %v907
    %1087 = vmatpush.msra.mxu0 %v905
    %1088 = vmatpush.msra.mxu0 %v903
    %1089 = vmatpush.msra.mxu0 %v901
    %1090 = vmatpush.msra.mxu0 %v899
    %1091 = vmatpush.msra.mxu0 %v897
    %1092 = vmatpush.msra.mxu0 %v895
    %1093 = vmatpush.msra.mxu0 %v893
    %1094 = vmatpush.msra.mxu0 %v891
    %1095 = vmatpush.msra.mxu0 %v889
    %1096 = vmatpush.msra.mxu0 %v887
    %1097 = vmatpush.msra.mxu0 %v885
    %1098 = vmatpush.msra.mxu0 %v883
    %1099 = vmatpush.msra.mxu0 %v881
    %1100 = vmatpush.msra.mxu0 %v879
    %1101 = vmatmul.f32.gmra.mxu0 %v639
    %v1102 = vpop.f32.mrf.mxu0
    %v1103 = vadd.f32 %v1077, %v1102
    %1104 = vmatmul.f32.gmra.mxu0 %v779
    %v1105 = vpop.f32.mrf.mxu0
    %v1106 = vadd.f32 %v1080, %v1105
    %1107 = vmatmul.f32.gmra.mxu0 %v751
    %v1108 = vpop.f32.mrf.mxu0
    %v1109 = vadd.f32 %v1083, %v1108
    %1110 = vdwg.mxu0
    %1111 = vmatpush.msra.mxu0 %v941
    %1112 = vmatpush.msra.mxu0 %v939
    %1113 = vmatpush.msra.mxu0 %v937
    %1114 = vmatpush.msra.mxu0 %v935
    %1115 = vmatpush.msra.mxu0 %v933
    %1116 = vmatpush.msra.mxu0 %v931
    %1117 = vmatpush.msra.mxu0 %v929
    %1118 = vmatpush.msra.mxu0 %v927
    %1119 = vmatpush.msra.mxu0 %v925
    %1120 = vmatpush.msra.mxu0 %v923
    %1121 = vmatpush.msra.mxu0 %v921
    %1122 = vmatpush.msra.mxu0 %v919
    %1123 = vmatpush.msra.mxu0 %v917
    %1124 = vmatpush.msra.mxu0 %v915
    %1125 = vmatpush.msra.mxu0 %v913
    %1126 = vmatpush.msra.mxu0 %v911
    %1127 = vmatmul.f32.gmra.mxu0 %v608
    %v1128 = vpop.f32.mrf.mxu0
    %v1129 = vadd.f32 %v1103, %v1128
    %1130 = vmatmul.f32.gmra.mxu0 %v780
    %v1131 = vpop.f32.mrf.mxu0
    %v1132 = vadd.f32 %v1106, %v1131
    %1133 = vmatmul.f32.gmra.mxu0 %v754
    %v1134 = vpop.f32.mrf.mxu0
    %v1135 = vadd.f32 %v1109, %v1134
    %1136 = vdwg.mxu0
    %1137 = vmatpush.msra.mxu0 %v973
    %1138 = vmatpush.msra.mxu0 %v971
    %1139 = vmatpush.msra.mxu0 %v969
    %1140 = vmatpush.msra.mxu0 %v967
    %1141 = vmatpush.msra.mxu0 %v965
    %1142 = vmatpush.msra.mxu0 %v963
    %1143 = vmatpush.msra.mxu0 %v961
    %1144 = vmatpush.msra.mxu0 %v959
    %1145 = vmatpush.msra.mxu0 %v957
    %1146 = vmatpush.msra.mxu0 %v955
    %1147 = vmatpush.msra.mxu0 %v953
    %1148 = vmatpush.msra.mxu0 %v951
    %1149 = vmatpush.msra.mxu0 %v949
    %1150 = vmatpush.msra.mxu0 %v947
    %1151 = vmatpush.msra.mxu0 %v945
    %1152 = vmatpush.msra.mxu0 %v943
    %1153 = vmatmul.f32.gmra.mxu0 %v641
    %v1154 = vpop.f32.mrf.mxu0
    %v1155 = vadd.f32 %v1129, %v1154
    %1156 = vmatmul.f32.gmra.mxu0 %v781
    %v1157 = vpop.f32.mrf.mxu0
    %v1158 = vadd.f32 %v1132, %v1157
    %1159 = vmatmul.f32.gmra.mxu0 %v757
    %v1160 = vpop.f32.mrf.mxu0
    %v1161 = vadd.f32 %v1135, %v1160
    %1162 = vdwg.mxu0
    %1163 = vmatpush.msra.mxu0 0.0
    %1164 = vmatpush.msra.mxu0 0.0
    %1165 = vmatpush.msra.mxu0 0.0
    %1166 = vmatpush.msra.mxu0 0.0
    %1167 = vmatpush.msra.mxu0 0.0
    %1168 = vmatpush.msra.mxu0 0.0
    %1169 = vmatpush.msra.mxu0 0.0
    %1170 = vmatpush.msra.mxu0 %v991
    %1171 = vmatpush.msra.mxu0 %v989
    %1172 = vmatpush.msra.mxu0 %v987
    %1173 = vmatpush.msra.mxu0 %v985
    %1174 = vmatpush.msra.mxu0 %v983
    %1175 = vmatpush.msra.mxu0 %v981
    %1176 = vmatpush.msra.mxu0 %v979
    %1177 = vmatpush.msra.mxu0 %v977
    %1178 = vmatpush.msra.mxu0 %v975
    %1179 = vmatmul.f32.gmra.mxu0 %v1000
    %v1180 = vpop.f32.mrf.mxu0
    %v1181 = vadd.f32 %v1155, %v1180
    %1182 = vmatmul.f32.gmra.mxu0 %v1003
    %v1183 = vpop.f32.mrf.mxu0
    %v1184 = vadd.f32 %v1158, %v1183
    %1185 = vmatmul.f32.gmra.mxu0 %v1005
    %v1186 = vpop.f32.mrf.mxu0
    %v1187 = vadd.f32 %v1161, %v1186
    %1188 = vdwg.mxu0
    %1189 = vmatpush.msra.mxu0 %v814
    %1190 = vmatpush.msra.mxu0 %v812
    %1191 = vmatpush.msra.mxu0 %v810
    %1192 = vmatpush.msra.mxu0 %v808
    %1193 = vmatpush.msra.mxu0 %v806
    %1194 = vmatpush.msra.mxu0 %v804
    %1195 = vmatpush.msra.mxu0 %v802
    %1196 = vmatpush.msra.mxu0 %v800
    %1197 = vmatpush.msra.mxu0 %v798
    %1198 = vmatpush.msra.mxu0 %v796
    %1199 = vmatpush.msra.mxu0 %v794
    %1200 = vmatpush.msra.mxu0 %v792
    %1201 = vmatpush.msra.mxu0 %v790
    %1202 = vmatpush.msra.mxu0 %v788
    %1203 = vmatpush.msra.mxu0 %v786
    %1204 = vmatpush.msra.mxu0 %v784
    %1205 = vmatmul.f32.gmra.mxu0 %v504
    %v1206 = vpop.f32.mrf.mxu0
    %v1207 = vadd.f32 %v996, %v1206
    %1208 = vmatmul.f32.gmra.mxu0 %v776
    %v1209 = vpop.f32.mrf.mxu0
    %v1210 = vadd.f32 %v996, %v1209
    %1211 = vmatmul.f32.gmra.mxu0 %v709
    %v1212 = vpop.f32.mrf.mxu0
    %v1213 = vadd.f32 %v996, %v1212
    %1214 = vdwg.mxu0
    %1215 = vmatpush.msra.mxu0 %v846
    %1216 = vmatpush.msra.mxu0 %v844
    %1217 = vmatpush.msra.mxu0 %v842
    %1218 = vmatpush.msra.mxu0 %v840
    %1219 = vmatpush.msra.mxu0 %v838
    %1220 = vmatpush.msra.mxu0 %v836
    %1221 = vmatpush.msra.mxu0 %v834
    %1222 = vmatpush.msra.mxu0 %v832
    %1223 = vmatpush.msra.mxu0 %v830
    %1224 = vmatpush.msra.mxu0 %v828
    %1225 = vmatpush.msra.mxu0 %v826
    %1226 = vmatpush.msra.mxu0 %v824
    %1227 = vmatpush.msra.mxu0 %v822
    %1228 = vmatpush.msra.mxu0 %v820
    %1229 = vmatpush.msra.mxu0 %v818
    %1230 = vmatpush.msra.mxu0 %v816
    %1231 = vmatmul.f32.gmra.mxu0 %v635
    %v1232 = vpop.f32.mrf.mxu0
    %v1233 = vadd.f32 %v1207, %v1232
    %1234 = vmatmul.f32.gmra.mxu0 %v777
    %v1235 = vpop.f32.mrf.mxu0
    %v1236 = vadd.f32 %v1210, %v1235
    %1237 = vmatmul.f32.gmra.mxu0 %v745
    %v1238 = vpop.f32.mrf.mxu0
    %v1239 = vadd.f32 %v1213, %v1238
    %1240 = vdwg.mxu0
    %1241 = vmatpush.msra.mxu0 %v878
    %1242 = vmatpush.msra.mxu0 %v876
    %1243 = vmatpush.msra.mxu0 %v874
    %1244 = vmatpush.msra.mxu0 %v872
    %1245 = vmatpush.msra.mxu0 %v870
    %1246 = vmatpush.msra.mxu0 %v868
    %1247 = vmatpush.msra.mxu0 %v866
    %1248 = vmatpush.msra.mxu0 %v864
    %1249 = vmatpush.msra.mxu0 %v862
    %1250 = vmatpush.msra.mxu0 %v860
    %1251 = vmatpush.msra.mxu0 %v858
    %1252 = vmatpush.msra.mxu0 %v856
    %1253 = vmatpush.msra.mxu0 %v854
    %1254 = vmatpush.msra.mxu0 %v852
    %1255 = vmatpush.msra.mxu0 %v850
    %1256 = vmatpush.msra.mxu0 %v848
    %1257 = vmatmul.f32.gmra.mxu0 %v637
    %v1258 = vpop.f32.mrf.mxu0
    %v1259 = vadd.f32 %v1233, %v1258
    %1260 = vmatmul.f32.gmra.mxu0 %v778
    %v1261 = vpop.f32.mrf.mxu0
    %v1262 = vadd.f32 %v1236, %v1261
    %1263 = vmatmul.f32.gmra.mxu0 %v748
    %v1264 = vpop.f32.mrf.mxu0
    %v1265 = vadd.f32 %v1239, %v1264
    %1266 = vdwg.mxu0
    %1267 = vmatpush.msra.mxu0 %v910
    %1268 = vmatpush.msra.mxu0 %v908
    %1269 = vmatpush.msra.mxu0 %v906
    %1270 = vmatpush.msra.mxu0 %v904
    %1271 = vmatpush.msra.mxu0 %v902
    %1272 = vmatpush.msra.mxu0 %v900
    %1273 = vmatpush.msra.mxu0 %v898
    %1274 = vmatpush.msra.mxu0 %v896
    %1275 = vmatpush.msra.mxu0 %v894
    %1276 = vmatpush.msra.mxu0 %v892
    %1277 = vmatpush.msra.mxu0 %v890
    %1278 = vmatpush.msra.mxu0 %v888
    %1279 = vmatpush.msra.mxu0 %v886
    %1280 = vmatpush.msra.mxu0 %v884
    %1281 = vmatpush.msra.mxu0 %v882
    %1282 = vmatpush.msra.mxu0 %v880
    %1283 = vmatmul.f32.gmra.mxu0 %v639
    %v1284 = vpop.f32.mrf.mxu0
    %v1285 = vadd.f32 %v1259, %v1284
    %1286 = vmatmul.f32.gmra.mxu0 %v779
    %v1287 = vpop.f32.mrf.mxu0
    %v1288 = vadd.f32 %v1262, %v1287
    %1289 = vmatmul.f32.gmra.mxu0 %v751
    %v1290 = vpop.f32.mrf.mxu0
    %v1291 = vadd.f32 %v1265, %v1290
    %1292 = vdwg.mxu0
    %1293 = vmatpush.msra.mxu0 %v942
    %1294 = vmatpush.msra.mxu0 %v940
    %1295 = vmatpush.msra.mxu0 %v938
    %1296 = vmatpush.msra.mxu0 %v936
    %1297 = vmatpush.msra.mxu0 %v934
    %1298 = vmatpush.msra.mxu0 %v932
    %1299 = vmatpush.msra.mxu0 %v930
    %1300 = vmatpush.msra.mxu0 %v928
    %1301 = vmatpush.msra.mxu0 %v926
    %1302 = vmatpush.msra.mxu0 %v924
    %1303 = vmatpush.msra.mxu0 %v922
    %1304 = vmatpush.msra.mxu0 %v920
    %1305 = vmatpush.msra.mxu0 %v918
    %1306 = vmatpush.msra.mxu0 %v916
    %1307 = vmatpush.msra.mxu0 %v914
    %1308 = vmatpush.msra.mxu0 %v912
    %1309 = vmatmul.f32.gmra.mxu0 %v608
    %v1310 = vpop.f32.mrf.mxu0
    %v1311 = vadd.f32 %v1285, %v1310
    %1312 = vmatmul.f32.gmra.mxu0 %v780
    %v1313 = vpop.f32.mrf.mxu0
    %v1314 = vadd.f32 %v1288, %v1313
    %1315 = vmatmul.f32.gmra.mxu0 %v754
    %v1316 = vpop.f32.mrf.mxu0
    %v1317 = vadd.f32 %v1291, %v1316
    %1318 = vdwg.mxu0
    %1319 = vmatpush.msra.mxu0 %v974
    %1320 = vmatpush.msra.mxu0 %v972
    %1321 = vmatpush.msra.mxu0 %v970
    %1322 = vmatpush.msra.mxu0 %v968
    %1323 = vmatpush.msra.mxu0 %v966
    %1324 = vmatpush.msra.mxu0 %v964
    %1325 = vmatpush.msra.mxu0 %v962
    %1326 = vmatpush.msra.mxu0 %v960
    %1327 = vmatpush.msra.mxu0 %v958
    %1328 = vmatpush.msra.mxu0 %v956
    %1329 = vmatpush.msra.mxu0 %v954
    %1330 = vmatpush.msra.mxu0 %v952
    %1331 = vmatpush.msra.mxu0 %v950
    %1332 = vmatpush.msra.mxu0 %v948
    %1333 = vmatpush.msra.mxu0 %v946
    %1334 = vmatpush.msra.mxu0 %v944
    %1335 = vmatmul.f32.gmra.mxu0 %v641
    %v1336 = vpop.f32.mrf.mxu0
    %v1337 = vadd.f32 %v1311, %v1336
    %1338 = vmatmul.f32.gmra.mxu0 %v781
    %v1339 = vpop.f32.mrf.mxu0
    %v1340 = vadd.f32 %v1314, %v1339
    %1341 = vmatmul.f32.gmra.mxu0 %v757
    %v1342 = vpop.f32.mrf.mxu0
    %v1343 = vadd.f32 %v1317, %v1342
    %1344 = vdwg.mxu0
    %1345 = vmatpush.msra.mxu0 0.0
    %1346 = vmatpush.msra.mxu0 0.0
    %1347 = vmatpush.msra.mxu0 0.0
    %1348 = vmatpush.msra.mxu0 0.0
    %1349 = vmatpush.msra.mxu0 0.0
    %1350 = vmatpush.msra.mxu0 0.0
    %1351 = vmatpush.msra.mxu0 0.0
    %1352 = vmatpush.msra.mxu0 %v992
    %1353 = vmatpush.msra.mxu0 %v990
    %1354 = vmatpush.msra.mxu0 %v988
    %1355 = vmatpush.msra.mxu0 %v986
    %1356 = vmatpush.msra.mxu0 %v984
    %1357 = vmatpush.msra.mxu0 %v982
    %1358 = vmatpush.msra.mxu0 %v980
    %1359 = vmatpush.msra.mxu0 %v978
    %1360 = vmatpush.msra.mxu0 %v976
    %1361 = vmatmul.f32.gmra.mxu0 %v1000
    %v1362 = vpop.f32.mrf.mxu0
    %v1363 = vadd.f32 %v1337, %v1362
    %1364 = vmatmul.f32.gmra.mxu0 %v1003
    %v1365 = vpop.f32.mrf.mxu0
    %v1366 = vadd.f32 %v1340, %v1365
    %1367 = vmatmul.f32.gmra.mxu0 %v1005
    %v1368 = vpop.f32.mrf.mxu0
    %v1369 = vadd.f32 %v1343, %v1368
    %1370 = vdwg.mxu0
    %v1371 = vmax.f32 %v1181, 0.0
    %v1372 = vmax.f32 %v1363, 0.0
    %v1373 = vmax.f32 %v1184, 0.0
    %v1374 = vmax.f32 %v1366, 0.0
    %v1375 = vmax.f32 %v1187, 0.0
    %v1376 = vmax.f32 %v1369, 0.0
    %v1377 = vld [vmem:[%s6] sm:$0xff]
    %v1378 = vld [vmem:[%s6 + $0x8] sm:$0x3]
    %vm1379 = vcmask 162816
    %v1381 = vsel %vm1379, %v1377, 0
    %v1384 = vsel %vm1379, %v1378, 0
    %v1387 = vsel %vm217, %v1375, 0
    %v1390 = vsel %vm217, %v1376, 0
    %1392 = vmatpush.msra.mxu0 0.0
    %1393 = vmatpush.msra.mxu0 0.0
    %1394 = vmatpush.msra.mxu0 0.0
    %1395 = vmatpush.msra.mxu0 0.0
    %1396 = vmatpush.msra.mxu0 0.0
    %1397 = vmatpush.msra.mxu0 0.0
    %1398 = vmatpush.msra.mxu0 0.0
    %1399 = vmatpush.msra.mxu0 0.0
    %1400 = vmatpush.msra.mxu0 0.0
    %1401 = vmatpush.msra.mxu0 0.0
    %1402 = vmatpush.msra.mxu0 0.0
    %1403 = vmatpush.msra.mxu0 0.0
    %1404 = vmatpush.msra.mxu0 0.0
    %1405 = vmatpush.msra.mxu0 %v1387
    %1406 = vmatpush.msra.mxu0 %v1373
    %1407 = vmatpush.msra.mxu0 %v1371
    %1408 = vmatmul.f32.gmra.mxu0 %v1381
    %v1409 = vpop.f32.mrf.mxu0
    %v1410 = vadd.f32 0.0, %v1409
    %1411 = vmatmul.f32.gmra.mxu0 %v1384
    %v1412 = vpop.f32.mrf.mxu0
    %v1413 = vadd.f32 0.0, %v1412
    %1414 = vdwg.mxu0
    %1415 = vmatpush.msra.mxu0 0.0
    %1416 = vmatpush.msra.mxu0 0.0
    %1417 = vmatpush.msra.mxu0 0.0
    %1418 = vmatpush.msra.mxu0 0.0
    %1419 = vmatpush.msra.mxu0 0.0
    %1420 = vmatpush.msra.mxu0 0.0
    %1421 = vmatpush.msra.mxu0 0.0
    %1422 = vmatpush.msra.mxu0 0.0
    %1423 = vmatpush.msra.mxu0 0.0
    %1424 = vmatpush.msra.mxu0 0.0
    %1425 = vmatpush.msra.mxu0 0.0
    %1426 = vmatpush.msra.mxu0 0.0
    %1427 = vmatpush.msra.mxu0 0.0
    %1428 = vmatpush.msra.mxu0 %v1390
    %1429 = vmatpush.msra.mxu0 %v1374
    %1430 = vmatpush.msra.mxu0 %v1372
    %1431 = vmatmul.f32.gmra.mxu0 %v1381
    %v1432 = vpop.f32.mrf.mxu0
    %v1433 = vadd.f32 0.0, %v1432
    %1434 = vmatmul.f32.gmra.mxu0 %v1384
    %v1435 = vpop.f32.mrf.mxu0
    %v1436 = vadd.f32 0.0, %v1435
    %1437 = vdwg.mxu0
    %v1440 = vrot.slane %v1410, 1
    %v1441 = vrot.slane %v1433, 1
    %1442 = vrot.lane.b32.xlu0 %v1440, 32
    %v1443 = vpop.permute.xlu0 %1442
    %1444 = vrot.lane.b32.xlu0 %v1441, 32
    %v1445 = vpop.permute.xlu0 %1444
    %v1446 = vsel %vm113, %v1443, %v1445
    %v1449 = vrot.slane %v1410, 2
    %v1450 = vrot.slane %v1433, 2
    %1451 = vrot.lane.b32.xlu0 %v1449, 64
    %v1452 = vpop.permute.xlu0 %1451
    %1453 = vrot.lane.b32.xlu0 %v1450, 64
    %v1454 = vpop.permute.xlu0 %1453
    %v1455 = vsel %vm118, %v1452, %v1454
    %v1458 = vrot.slane %v1410, 3
    %v1459 = vrot.slane %v1433, 3
    %1460 = vrot.lane.b32.xlu0 %v1458, 96
    %v1461 = vpop.permute.xlu0 %1460
    %1462 = vrot.lane.b32.xlu0 %v1459, 96
    %v1463 = vpop.permute.xlu0 %1462
    %v1464 = vsel %vm123, %v1461, %v1463
    %v1467 = vrot.slane %v1410, 4
    %v1468 = vrot.slane %v1433, 4
    %v1471 = vsel %vm113, %v1433, %v1443
    %v1472 = vsel %vm118, %v1446, %v1452
    %v1473 = vsel %vm123, %v1455, %v1461
    %v1476 = vrot.slane %v1413, 3
    %v1477 = vrot.slane %v1436, 3
    %1478 = vrot.lane.b32.xlu0 %v1476, 96
    %v1479 = vpop.permute.xlu0 %1478
    %1480 = vrot.lane.b32.xlu0 %v1477, 96
    %v1481 = vpop.permute.xlu0 %1480
    %v1482 = vsel %vm123, %v1479, %v1481
    %v1484 = vrot.slane %v1413, 4
    %v1485 = vrot.slane %v1436, 4
    %v1486 = vsel %vm123, %v1455, %v1479
    %v1490 = vrot.slane %v1471, 4
    %v1491 = vrot.slane %v1472, 4
    %v1492 = vrot.slane %v1486, 4
    %v1493 = vrot.slane %v1482, 4
    %v1494 = vrot.slane %v1484, 4
    %v1495 = vrot.slane %v1485, 4
    %vm1502 = vcmask 1040384
    %v1503 = vsel %vm1502, %v1410, %v1467
    %v1504 = vsel %vm1502, %v1471, %v1490
    %v1505 = vsel %vm1502, %v1472, %v1491
    %v1506 = vsel %vm1502, %v1473, %v1492
    %v1507 = vsel %vm1502, %v1464, %v1493
    %v1508 = vsel %vm1502, %v1467, %v1494
    %v1509 = vsel %vm1502, %v1468, %v1495
    %v1510 = vld [vmem:[%s7] sm:$0xff]
    %v1511 = vld [vmem:[%s7 + $0x8] sm:$0xff]
    %v1512 = vld [vmem:[%s7 + $0x10] sm:$0xff]
    %v1513 = vld [vmem:[%s7 + $0x18] sm:$0xff]
    %v1514 = vld [vmem:[%s7 + $0x20] sm:$0xff]
    %v1515 = vld [vmem:[%s7 + $0x28] sm:$0xff]
    %v1516 = vld [vmem:[%s7 + $0x30] sm:$0xff]
    %v1517 = vld [vmem:[%s7 + $0x38] sm:$0xff]
    %v1518 = vld [vmem:[%s7 + $0x40] sm:$0xff]
    %v1519 = vld [vmem:[%s7 + $0x48] sm:$0xff]
    %v1520 = vld [vmem:[%s7 + $0x50] sm:$0xff]
    %v1521 = vld [vmem:[%s7 + $0x58] sm:$0xff]
    %v1522 = vld [vmem:[%s7 + $0x60] sm:$0xff]
    %v1523 = vld [vmem:[%s7 + $0x68] sm:$0xff]
    %v1524 = vld [vmem:[%s7 + $0x70] sm:$0xff]
    %v1525 = vld [vmem:[%s7 + $0x78] sm:$0xff]
    %v1526 = vld [vmem:[%s7 + $0x80] sm:$0xff]
    %v1527 = vld [vmem:[%s7 + $0x88] sm:$0xff]
    %v1528 = vld [vmem:[%s7 + $0x90] sm:$0xff]
    %v1529 = vld [vmem:[%s7 + $0x98] sm:$0xff]
    %v1530 = vld [vmem:[%s7 + $0xa0] sm:$0xff]
    %v1531 = vld [vmem:[%s7 + $0xa8] sm:$0xff]
    %v1532 = vld [vmem:[%s7 + $0xb0] sm:$0xff]
    %v1533 = vld [vmem:[%s7 + $0xb8] sm:$0xff]
    %v1534 = vld [vmem:[%s7 + $0xc0] sm:$0xff]
    %v1535 = vld [vmem:[%s7 + $0xc8] sm:$0xff]
    %v1536 = vld [vmem:[%s7 + $0xd0] sm:$0xff]
    %v1537 = vld [vmem:[%s7 + $0xd8] sm:$0xff]
    %v1538 = vld [vmem:[%s7 + $0xe0] sm:$0xff]
    %v1539 = vld [vmem:[%s7 + $0xe8] sm:$0xff]
    %v1540 = vld [vmem:[%s7 + $0xf0] sm:$0xff]
    %v1541 = vld [vmem:[%s7 + $0xf8] sm:$0xff]
    %v1542 = vld [vmem:[%s7 + $0x100] sm:$0xff]
    %v1543 = vld [vmem:[%s7 + $0x108] sm:$0xff]
    %v1544 = vld [vmem:[%s7 + $0x110] sm:$0xff]
    %v1545 = vld [vmem:[%s7 + $0x118] sm:$0xff]
    %v1546 = vld [vmem:[%s7 + $0x120] sm:$0xff]
    %v1547 = vld [vmem:[%s7 + $0x128] sm:$0xff]
    %v1548 = vld [vmem:[%s7 + $0x130] sm:$0xff]
    %v1549 = vld [vmem:[%s7 + $0x138] sm:$0xff]
    %v1550 = vld [vmem:[%s7 + $0x140] sm:$0xff]
    %v1551 = vld [vmem:[%s7 + $0x148] sm:$0xff]
    %v1552 = vld [vmem:[%s7 + $0x150] sm:$0xff]
    %v1553 = vld [vmem:[%s7 + $0x158] sm:$0xff]
    %v1554 = vld [vmem:[%s7 + $0x160] sm:$0xff]
    %v1555 = vld [vmem:[%s7 + $0x168] sm:$0xff]
    %v1556 = vld [vmem:[%s7 + $0x170] sm:$0xff]
    %v1557 = vld [vmem:[%s7 + $0x178] sm:$0xff]
    %v1558 = vld [vmem:[%s7 + $0x180] sm:$0xff]
    %v1559 = vld [vmem:[%s7 + $0x188] sm:$0xff]
    %v1560 = vld [vmem:[%s7 + $0x190] sm:$0xff]
    %v1561 = vld [vmem:[%s7 + $0x198] sm:$0xff]
    %v1562 = vld [vmem:[%s7 + $0x1a0] sm:$0xff]
    %v1563 = vld [vmem:[%s7 + $0x1a8] sm:$0xff]
    %v1564 = vld [vmem:[%s7 + $0x1b0] sm:$0xff]
    %v1565 = vld [vmem:[%s7 + $0x1b8] sm:$0xff]
    %v1566 = vld [vmem:[%s7 + $0x1c0] sm:$0xff]
    %v1567 = vld [vmem:[%s7 + $0x1c8] sm:$0xff]
    %v1568 = vld [vmem:[%s7 + $0x1d0] sm:$0xff]
    %v1569 = vld [vmem:[%s7 + $0x1d8] sm:$0xff]
    %v1570 = vld [vmem:[%s7 + $0x1e0] sm:$0xff]
    %v1571 = vld [vmem:[%s7 + $0x1e8] sm:$0xff]
    %v1572 = vld [vmem:[%s7 + $0x1f0] sm:$0xff]
    %v1573 = vld [vmem:[%s7 + $0x1f8] sm:$0xff]
    %v1574 = vld [vmem:[%s7 + $0x200] sm:$0xff]
    %v1575 = vld [vmem:[%s7 + $0x208] sm:$0xff]
    %v1576 = vld [vmem:[%s7 + $0x210] sm:$0xff]
    %v1577 = vld [vmem:[%s7 + $0x218] sm:$0xff]
    %v1578 = vld [vmem:[%s7 + $0x220] sm:$0xff]
    %v1579 = vld [vmem:[%s7 + $0x228] sm:$0xff]
    %v1580 = vld [vmem:[%s7 + $0x230] sm:$0xff]
    %v1581 = vld [vmem:[%s7 + $0x238] sm:$0xff]
    %v1582 = vld [vmem:[%s7 + $0x240] sm:$0xff]
    %v1583 = vld [vmem:[%s7 + $0x248] sm:$0xff]
    %v1584 = vld [vmem:[%s7 + $0x250] sm:$0xff]
    %v1585 = vld [vmem:[%s7 + $0x258] sm:$0xff]
    %v1586 = vld [vmem:[%s7 + $0x260] sm:$0xff]
    %v1587 = vld [vmem:[%s7 + $0x268] sm:$0xff]
    %v1588 = vld [vmem:[%s7 + $0x270] sm:$0xff]
    %v1589 = vld [vmem:[%s7 + $0x278] sm:$0xff]
    %v1590 = vld [vmem:[%s7 + $0x280] sm:$0xff]
    %v1591 = vld [vmem:[%s7 + $0x288] sm:$0xff]
    %v1592 = vld [vmem:[%s7 + $0x290] sm:$0xff]
    %v1593 = vld [vmem:[%s7 + $0x298] sm:$0xff]
    %v1594 = vld [vmem:[%s7 + $0x2a0] sm:$0xff]
    %v1595 = vld [vmem:[%s7 + $0x2a8] sm:$0xff]
    %v1596 = vld [vmem:[%s7 + $0x2b0] sm:$0xff]
    %v1597 = vld [vmem:[%s7 + $0x2b8] sm:$0xff]
    %v1598 = vld [vmem:[%s7 + $0x2c0] sm:$0xff]
    %v1599 = vld [vmem:[%s7 + $0x2c8] sm:$0xff]
    %v1600 = vld [vmem:[%s7 + $0x2d0] sm:$0xff]
    %v1601 = vld [vmem:[%s7 + $0x2d8] sm:$0xff]
    %v1602 = vld [vmem:[%s7 + $0x2e0] sm:$0xff]
    %v1603 = vld [vmem:[%s7 + $0x2e8] sm:$0xff]
    %v1604 = vld [vmem:[%s7 + $0x2f0] sm:$0xff]
    %v1605 = vld [vmem:[%s7 + $0x2f8] sm:$0xff]
    %v1606 = vld [vmem:[%s7 + $0x300] sm:$0xff]
    %v1607 = vld [vmem:[%s7 + $0x308] sm:$0xff]
    %v1608 = vld [vmem:[%s7 + $0x310] sm:$0xff]
    %v1609 = vld [vmem:[%s7 + $0x318] sm:$0xff]
    %v1610 = vld [vmem:[%s8] sm:$0x1]
    %v1612 = vperm.slane %v1610, 0
    %v1615 = vsel %vm113, %v1509, 0
    %1617 = vmatpush.msra.mxu0 %v1525
    %1618 = vmatpush.msra.mxu0 %v1524
    %1619 = vmatpush.msra.mxu0 %v1523
    %1620 = vmatpush.msra.mxu0 %v1522
    %1621 = vmatpush.msra.mxu0 %v1521
    %1622 = vmatpush.msra.mxu0 %v1520
    %1623 = vmatpush.msra.mxu0 %v1519
    %1624 = vmatpush.msra.mxu0 %v1518
    %1625 = vmatpush.msra.mxu0 %v1517
    %1626 = vmatpush.msra.mxu0 %v1516
    %1627 = vmatpush.msra.mxu0 %v1515
    %1628 = vmatpush.msra.mxu0 %v1514
    %1629 = vmatpush.msra.mxu0 %v1513
    %1630 = vmatpush.msra.mxu0 %v1512
    %1631 = vmatpush.msra.mxu0 %v1511
    %1632 = vmatpush.msra.mxu0 %v1510
    %1633 = vmatmul.f32.gmra.mxu0 %v1503
    %v1634 = vpop.f32.mrf.mxu0
    %v1635 = vadd.f32 %v1612, %v1634
    %1636 = vdwg.mxu0
    %1637 = vmatpush.msra.mxu0 %v1541
    %1638 = vmatpush.msra.mxu0 %v1540
    %1639 = vmatpush.msra.mxu0 %v1539
    %1640 = vmatpush.msra.mxu0 %v1538
    %1641 = vmatpush.msra.mxu0 %v1537
    %1642 = vmatpush.msra.mxu0 %v1536
    %1643 = vmatpush.msra.mxu0 %v1535
    %1644 = vmatpush.msra.mxu0 %v1534
    %1645 = vmatpush.msra.mxu0 %v1533
    %1646 = vmatpush.msra.mxu0 %v1532
    %1647 = vmatpush.msra.mxu0 %v1531
    %1648 = vmatpush.msra.mxu0 %v1530
    %1649 = vmatpush.msra.mxu0 %v1529
    %1650 = vmatpush.msra.mxu0 %v1528
    %1651 = vmatpush.msra.mxu0 %v1527
    %1652 = vmatpush.msra.mxu0 %v1526
    %1653 = vmatmul.f32.gmra.mxu0 %v1504
    %v1654 = vpop.f32.mrf.mxu0
    %v1655 = vadd.f32 %v1635, %v1654
    %1656 = vdwg.mxu0
    %1657 = vmatpush.msra.mxu0 %v1557
    %1658 = vmatpush.msra.mxu0 %v1556
    %1659 = vmatpush.msra.mxu0 %v1555
    %1660 = vmatpush.msra.mxu0 %v1554
    %1661 = vmatpush.msra.mxu0 %v1553
    %1662 = vmatpush.msra.mxu0 %v1552
    %1663 = vmatpush.msra.mxu0 %v1551
    %1664 = vmatpush.msra.mxu0 %v1550
    %1665 = vmatpush.msra.mxu0 %v1549
    %1666 = vmatpush.msra.mxu0 %v1548
    %1667 = vmatpush.msra.mxu0 %v1547
    %1668 = vmatpush.msra.mxu0 %v1546
    %1669 = vmatpush.msra.mxu0 %v1545
    %1670 = vmatpush.msra.mxu0 %v1544
    %1671 = vmatpush.msra.mxu0 %v1543
    %1672 = vmatpush.msra.mxu0 %v1542
    %1673 = vmatmul.f32.gmra.mxu0 %v1505
    %v1674 = vpop.f32.mrf.mxu0
    %v1675 = vadd.f32 %v1655, %v1674
    %1676 = vdwg.mxu0
    %1677 = vmatpush.msra.mxu0 %v1573
    %1678 = vmatpush.msra.mxu0 %v1572
    %1679 = vmatpush.msra.mxu0 %v1571
    %1680 = vmatpush.msra.mxu0 %v1570
    %1681 = vmatpush.msra.mxu0 %v1569
    %1682 = vmatpush.msra.mxu0 %v1568
    %1683 = vmatpush.msra.mxu0 %v1567
    %1684 = vmatpush.msra.mxu0 %v1566
    %1685 = vmatpush.msra.mxu0 %v1565
    %1686 = vmatpush.msra.mxu0 %v1564
    %1687 = vmatpush.msra.mxu0 %v1563
    %1688 = vmatpush.msra.mxu0 %v1562
    %1689 = vmatpush.msra.mxu0 %v1561
    %1690 = vmatpush.msra.mxu0 %v1560
    %1691 = vmatpush.msra.mxu0 %v1559
    %1692 = vmatpush.msra.mxu0 %v1558
    %1693 = vmatmul.f32.gmra.mxu0 %v1506
    %v1694 = vpop.f32.mrf.mxu0
    %v1695 = vadd.f32 %v1675, %v1694
    %1696 = vdwg.mxu0
    %1697 = vmatpush.msra.mxu0 %v1589
    %1698 = vmatpush.msra.mxu0 %v1588
    %1699 = vmatpush.msra.mxu0 %v1587
    %1700 = vmatpush.msra.mxu0 %v1586
    %1701 = vmatpush.msra.mxu0 %v1585
    %1702 = vmatpush.msra.mxu0 %v1584
    %1703 = vmatpush.msra.mxu0 %v1583
    %1704 = vmatpush.msra.mxu0 %v1582
    %1705 = vmatpush.msra.mxu0 %v1581
    %1706 = vmatpush.msra.mxu0 %v1580
    %1707 = vmatpush.msra.mxu0 %v1579
    %1708 = vmatpush.msra.mxu0 %v1578
    %1709 = vmatpush.msra.mxu0 %v1577
    %1710 = vmatpush.msra.mxu0 %v1576
    %1711 = vmatpush.msra.mxu0 %v1575
    %1712 = vmatpush.msra.mxu0 %v1574
    %1713 = vmatmul.f32.gmra.mxu0 %v1507
    %v1714 = vpop.f32.mrf.mxu0
    %v1715 = vadd.f32 %v1695, %v1714
    %1716 = vdwg.mxu0
    %1717 = vmatpush.msra.mxu0 %v1605
    %1718 = vmatpush.msra.mxu0 %v1604
    %1719 = vmatpush.msra.mxu0 %v1603
    %1720 = vmatpush.msra.mxu0 %v1602
    %1721 = vmatpush.msra.mxu0 %v1601
    %1722 = vmatpush.msra.mxu0 %v1600
    %1723 = vmatpush.msra.mxu0 %v1599
    %1724 = vmatpush.msra.mxu0 %v1598
    %1725 = vmatpush.msra.mxu0 %v1597
    %1726 = vmatpush.msra.mxu0 %v1596
    %1727 = vmatpush.msra.mxu0 %v1595
    %1728 = vmatpush.msra.mxu0 %v1594
    %1729 = vmatpush.msra.mxu0 %v1593
    %1730 = vmatpush.msra.mxu0 %v1592
    %1731 = vmatpush.msra.mxu0 %v1591
    %1732 = vmatpush.msra.mxu0 %v1590
    %1733 = vmatmul.f32.gmra.mxu0 %v1508
    %v1734 = vpop.f32.mrf.mxu0
    %v1735 = vadd.f32 %v1715, %v1734
    %1736 = vdwg.mxu0
    %1737 = vmatpush.msra.mxu0 0.0
    %1738 = vmatpush.msra.mxu0 0.0
    %1739 = vmatpush.msra.mxu0 0.0
    %1740 = vmatpush.msra.mxu0 0.0
    %1741 = vmatpush.msra.mxu0 0.0
    %1742 = vmatpush.msra.mxu0 0.0
    %1743 = vmatpush.msra.mxu0 0.0
    %1744 = vmatpush.msra.mxu0 0.0
    %1745 = vmatpush.msra.mxu0 0.0
    %1746 = vmatpush.msra.mxu0 0.0
    %1747 = vmatpush.msra.mxu0 0.0
    %1748 = vmatpush.msra.mxu0 0.0
    %1749 = vmatpush.msra.mxu0 %v1609
    %1750 = vmatpush.msra.mxu0 %v1608
    %1751 = vmatpush.msra.mxu0 %v1607
    %1752 = vmatpush.msra.mxu0 %v1606
    %1753 = vmatmul.f32.gmra.mxu0 %v1615
    %v1754 = vpop.f32.mrf.mxu0
    %v1755 = vadd.f32 %v1735, %v1754
    %1756 = vdwg.mxu0
    %v1757 = vmax.f32 %v1755, 0.0
    %v1758 = vld [vmem:[%s9] sm:$0xff]
    %v1759 = vld [vmem:[%s9 + $0x8] sm:$0xff]
    %v1760 = vld [vmem:[%s9 + $0x10] sm:$0xff]
    %v1761 = vld [vmem:[%s9 + $0x18] sm:$0xff]
    %v1762 = vld [vmem:[%s9 + $0x20] sm:$0xff]
    %v1763 = vld [vmem:[%s9 + $0x28] sm:$0xff]
    %v1764 = vld [vmem:[%s9 + $0x30] sm:$0xff]
    %v1765 = vld [vmem:[%s9 + $0x38] sm:$0xff]
    %v1766 = vld [vmem:[%s9 + $0x40] sm:$0xff]
    %v1767 = vld [vmem:[%s9 + $0x48] sm:$0xff]
    %v1768 = vld [vmem:[%s9 + $0x50] sm:$0xff]
    %v1769 = vld [vmem:[%s9 + $0x58] sm:$0xff]
    %v1770 = vld [vmem:[%s9 + $0x60] sm:$0xff]
    %v1771 = vld [vmem:[%s9 + $0x68] sm:$0xff]
    %v1772 = vld [vmem:[%s9 + $0x70] sm:$0xff]
    %v1773 = vld [vmem:[%s10] sm:$0x1]
    %v1775 = vperm.slane %v1773, 0
    %v1778 = vsel %vm607, %v1757, 0
    %1780 = vmatpush.msra.mxu0 0.0
    %1781 = vmatpush.msra.mxu0 %v1772
    %1782 = vmatpush.msra.mxu0 %v1771
    %1783 = vmatpush.msra.mxu0 %v1770
    %1784 = vmatpush.msra.mxu0 %v1769
    %1785 = vmatpush.msra.mxu0 %v1768
    %1786 = vmatpush.msra.mxu0 %v1767
    %1787 = vmatpush.msra.mxu0 %v1766
    %1788 = vmatpush.msra.mxu0 %v1765
    %1789 = vmatpush.msra.mxu0 %v1764
    %1790 = vmatpush.msra.mxu0 %v1763
    %1791 = vmatpush.msra.mxu0 %v1762
    %1792 = vmatpush.msra.mxu0 %v1761
    %1793 = vmatpush.msra.mxu0 %v1760
    %1794 = vmatpush.msra.mxu0 %v1759
    %1795 = vmatpush.msra.mxu0 %v1758
    %1796 = vmatmul.f32.gmra.mxu0 %v1778
    %v1797 = vpop.f32.mrf.mxu0
    %v1798 = vadd.f32 %v1775, %v1797
    %1799 = vdwg.mxu0
    %v1800 = vmax.f32 %v1798, 0.0
    %v1801 = vld [vmem:[%s11] sm:$0xff]
    %v1802 = vld [vmem:[%s11 + $0x8] sm:$0xff]
    %v1803 = vld [vmem:[%s11 + $0x10] sm:$0xff]
    %v1804 = vld [vmem:[%s11 + $0x18] sm:$0xff]
    %v1805 = vld [vmem:[%s11 + $0x20] sm:$0xff]
    %v1806 = vld [vmem:[%s11 + $0x28] sm:$0xff]
    %v1807 = vld [vmem:[%s11 + $0x30] sm:$0xff]
    %v1808 = vld [vmem:[%s11 + $0x38] sm:$0xff]
    %v1809 = vld [vmem:[%s11 + $0x40] sm:$0xff]
    %v1810 = vld [vmem:[%s11 + $0x48] sm:$0xff]
    %v1811 = vld [vmem:[%s11 + $0x50] sm:$0xf]
    %v1812 = vld [vmem:[%s12] sm:$0x1]
    %v1814 = vperm.slane %v1812, 0
    %vm1816 = vcmask 687104
    %v1818 = vsel %vm1816, %v1800, 0
    %v1821 = vsel %vm217, %v1811, 0
    %1823 = vmatpush.msra.mxu0 0.0
    %1824 = vmatpush.msra.mxu0 0.0
    %1825 = vmatpush.msra.mxu0 0.0
    %1826 = vmatpush.msra.mxu0 0.0
    %1827 = vmatpush.msra.mxu0 0.0
    %1828 = vmatpush.msra.mxu0 %v1821
    %1829 = vmatpush.msra.mxu0 %v1810
    %1830 = vmatpush.msra.mxu0 %v1809
    %1831 = vmatpush.msra.mxu0 %v1808
    %1832 = vmatpush.msra.mxu0 %v1807
    %1833 = vmatpush.msra.mxu0 %v1806
    %1834 = vmatpush.msra.mxu0 %v1805
    %1835 = vmatpush.msra.mxu0 %v1804
    %1836 = vmatpush.msra.mxu0 %v1803
    %1837 = vmatpush.msra.mxu0 %v1802
    %1838 = vmatpush.msra.mxu0 %v1801
    %1839 = vmatmul.f32.gmra.mxu0 %v1818
    %v1840 = vpop.f32.mrf.mxu0
    %v1841 = vadd.f32 %v1814, %v1840
    %1842 = vdwg.mxu0
    %vm1843 = vcmask 74752
    %1844 = vst.msk [vmem:[#allocation2] sm:$0x3] %vm1843, %v1841
    // Predicated region
    $region54: #{lenet_forward.1} parent=1 // pred_check
      _
    $region55: #{lenet_forward.1} parent=1 // pred_check_branch
      %1846 = sbr.rel (0) target = $region57
    $region56: #{lenet_forward.1} parent=1 // pred_region
      %1848 = vsyncadd [#allocation3], 0
      %s1850 = sshll.u32 [#allocation2], 4
      %s1851 = int_to_ptr.vmem [resolvable:$true] %s1850
      %s1852 = sshll.u32 %s13, 4
      %s1853 = int_to_ptr.hbm [resolvable:$true] %s1852
      %1855 = dma.vmem_to_hbm [thread:$0]  %s1851, 32, %s1853, [#allocation3]
    $region57: #{lenet_forward.1} parent=1 // pred_fallthru
      _
    // Predicated region
    $region58: #{lenet_forward.1} parent=1 // pred_check
      _
    $region59: #{lenet_forward.1} parent=1 // pred_check_branch
      %1857 = sbr.rel (0) target = $region61
    $region60: #{lenet_forward.1} parent=1 // pred_region
      %1859 = dma.done [#allocation3], 32
    $region61: #{lenet_forward.1} parent=1 // pred_fallthru
      _
    %1860 = vsyncpa [#allocation3], 1

</llo_original>
